<compile_context>
chip_gen: v7x
topology: tpu7x:2x2x1
jax: 0.10.0
libtpu: 0.0.40
codegen_flags: <defaults>
</compile_context>

<pallas_src>
import functools

import jax
import jax.numpy as jnp
from jax import lax
from jax.experimental import pallas as pl
from jax.experimental.pallas import tpu as pltpu


def _leaky(x):
    # torch F.leaky_relu / nn.LeakyReLU default negative_slope = 0.01
    return jnp.where(x > 0, x, 0.01 * x)


# Row indices inside the packed weight / bias stacks.
_W_SRC, _W_DST, _W_EPI, _W_COMB, _ATT_W_SRC, _ATT_W_DST, _ATT_W1, _W_OUT = range(8)
_AW2_ROW = 8  # extra bias-stack row holding att_w2^T


def aggregation_kernel(fs_ref, fd_ref, ep_ref, gsrc_ref, grat_ref, gdst_ref,
                       w_ref, b_ref, out_ref, *, emb):
    f32 = jnp.float32
    bf16 = jnp.bfloat16
    dot = functools.partial(jnp.dot, preferred_element_type=f32)

    b_all = b_ref[...]                                    # [9, Ep] f32

    def bias(k):
        return b_all[k:k + 1, :]                          # [1, Ep]

    g_dst = gdst_ref[...]                                 # [Ne, Nd] bf16 (exact 0/1)
    g_dst_f = g_dst.astype(f32)                           # f32 copy for VPU softmax path

    # --- node / epinion linear layers (dropout = identity, eval mode) ---
    feat_src = dot(fs_ref[...], w_ref[_W_SRC]) + bias(_W_SRC)      # [Ns, Ep]
    feat_dst = dot(fd_ref[...], w_ref[_W_DST]) + bias(_W_DST)      # [Nd, Ep]
    feat_epi = dot(ep_ref[...], w_ref[_W_EPI]) + bias(_W_EPI)      # [Rp, Ep]

    # --- per-edge gathers + u_add_e as two in-place bf16 MXU passes ---
    e = (dot(gsrc_ref[...], feat_src.astype(bf16))
         + dot(grat_ref[...], feat_epi.astype(bf16)))              # [Ne, Ep] f32

    # conbined_feat_linear(F.leaky_relu(e)) = LeakyReLU(Linear(LeakyReLU(e)))
    e = _leaky(dot(_leaky(e), w_ref[_W_COMB]) + bias(_W_COMB))     # [Ne, Ep]

    # --- attention (AttentionWithEpinions) ---
    e_ft = dot(e, w_ref[_ATT_W_SRC]) + bias(_ATT_W_SRC)            # [Ne, Ep]
    r_ft = dot(feat_dst, w_ref[_ATT_W_DST]) + bias(_ATT_W_DST)     # [Nd, Ep]
    r_ft_e = dot(g_dst, r_ft.astype(bf16))                         # [Ne, Ep] gather
    h = dot(_leaky(e_ft + r_ft_e), w_ref[_ATT_W1]) + bias(_ATT_W1)  # [Ne, Ep]
    # width-1 projection on VPU/XLU (lane reduce) instead of a 1-lane MXU pass.
    # att_b2 omitted: edge_softmax is shift-invariant, the constant cancels.
    score = jnp.sum(_leaky(h) * bias(_AW2_ROW), axis=-1, keepdims=True)  # [Ne, 1]

    # --- edge softmax: per-dst max stabilization; normalize AFTER segment sum
    masked = jnp.where(g_dst_f > 0, score, -1e30)                  # [Ne, Nd]
    seg_max = jnp.max(masked, axis=0, keepdims=True)               # [1, Nd]
    smax_e = jnp.sum(g_dst_f * seg_max, axis=-1, keepdims=True)    # [Ne, 1]
    exp_s = jnp.exp(score - smax_e)                                # [Ne, 1]

    # --- fused segment sums: stash exp_s in the known-zero padding lane `emb`
    # of the payload so a single G_dst^T contraction yields both the
    # unnormalized feature sum and the softmax denominator.
    e_pad = out_ref.shape[-1]
    ind = (lax.broadcasted_iota(jnp.int32, (1, e_pad), 1) == emb).astype(f32)
    payload = (exp_s * (e + ind)).astype(bf16)                     # [Ne, Ep]
    dn = (((0,), (0,)), ((), ()))                                  # contract edge axis
    fused = lax.dot_general(g_dst, payload, dn,
                            preferred_element_type=f32)            # [Nd, Ep]
    denom = jnp.sum(fused * ind, axis=-1, keepdims=True)           # [Nd, 1]
    n_f = fused * pl.reciprocal(jnp.maximum(denom, 1e-20), approx=True)

    # --- output head (lane `emb` of n_f is ~1, but w_out rows >= emb are 0) ---
    out = _leaky(dot(n_f, w_ref[_W_OUT]) + bias(_W_OUT))           # [Nd, Ep]
    out_ref[...] = out.astype(out_ref.dtype)


def _round_up(x, m):
    return ((x + m - 1) // m) * m


def _pad2(x, rows, cols):
    return jnp.pad(x, ((0, rows - x.shape[0]), (0, cols - x.shape[1])))


def build_forward(params, edge_src, edge_dst, edge_rating,
                  n_src, n_dst, n_rat, emb):
    """One-time prep (padded packed params, one-hots) + jitted per-call path."""
    f32 = jnp.float32
    bf16 = jnp.bfloat16
    e_pad = _round_up(emb, 128)      # lane-dense embedding axis
    r_pad = _round_up(n_rat, 8)      # sublane-aligned rating rows

    # ---- call-invariant packing (runs once) ----
    w_names = ("w_src", "w_dst", "w_epi", "w_comb",
               "att_w_src", "att_w_dst", "att_w1", "w_out")
    b_names = ("b_src", "b_dst", "b_epi", "b_comb",
               "att_b_src", "att_b_dst", "att_b1", "b_out")
    w_stack = jnp.stack([_pad2(params[k], e_pad, e_pad) for k in w_names])  # [8,Ep,Ep] f32
    b_rows = [_pad2(params[k], 1, e_pad) for k in b_names]
    b_rows.append(_pad2(params["att_w2"].T, 1, e_pad))                      # row 8 = aw2
    b_stack = jnp.concatenate(b_rows, axis=0).astype(f32)                   # [9, Ep]

    # one-hot gather matrices in bf16 (exact 0/1 values, half the DMA bytes)
    g_src = jax.nn.one_hot(edge_src, n_src, dtype=bf16)        # [Ne, Ns]
    g_rat = jax.nn.one_hot(edge_rating, r_pad, dtype=bf16)     # [Ne, Rp]
    g_dst = jax.nn.one_hot(edge_dst, n_dst, dtype=bf16)        # [Ne, Nd]

    vmem_spec = pl.BlockSpec(memory_space=pltpu.MemorySpace.VMEM)
    call = pl.pallas_call(
        functools.partial(aggregation_kernel, emb=emb),
        out_shape=jax.ShapeDtypeStruct((n_dst, e_pad), f32),
        in_specs=[vmem_spec] * 8,
        out_specs=vmem_spec,
        # working set (~0.6 MiB) << default scoped VMEM; no vmem_limit needed
    )

    @jax.jit
    def forward(feat_src_raw, feat_dst_raw, epinions):
        fs = _pad2(feat_src_raw, n_src, e_pad)
        fd = _pad2(feat_dst_raw, n_dst, e_pad)
        ep = _pad2(epinions, r_pad, e_pad)
        out_padded = call(fs, fd, ep, g_src, g_rat, g_dst, w_stack, b_stack)
        return out_padded[:, :emb]

    return forward


def reference_forward(feat_src_raw, feat_dst_raw, epinions,
                      edge_src, edge_dst, edge_rating, params, n_dst):
    """Pure-JAX reference with real segment ops (unpadded, f32)."""
    p = params
    feat_src = feat_src_raw @ p["w_src"] + p["b_src"]
    feat_dst = feat_dst_raw @ p["w_dst"] + p["b_dst"]
    feat_epi = (epinions @ p["w_epi"] + p["b_epi"])[edge_rating]
    e = feat_src[edge_src] + feat_epi
    e = _leaky(_leaky(e) @ p["w_comb"] + p["b_comb"])
    e_ft = e @ p["att_w_src"] + p["att_b_src"]
    r_ft = (feat_dst @ p["att_w_dst"] + p["att_b_dst"])[edge_dst]
    score = _leaky(e_ft + r_ft) @ p["att_w1"] + p["att_b1"]
    score = (_leaky(score) @ p["att_w2"] + p["att_b2"])[:, 0]          # [Ne]
    smax = jax.ops.segment_max(score, edge_dst, num_segments=n_dst)
    ex = jnp.exp(score - smax[edge_dst])
    den = jax.ops.segment_sum(ex, edge_dst, num_segments=n_dst)
    soft = (ex / den[edge_dst])[:, None]
    n_f = jax.ops.segment_sum(soft * e, edge_dst, num_segments=n_dst)
    return _leaky(n_f @ p["w_out"] + p["b_out"])


def _init_linear(key, fan_in, fan_out):
    # torch nn.Linear default init: U(-1/sqrt(fan_in), 1/sqrt(fan_in))
    kw, kb = jax.random.split(key)
    bound = 1.0 / (fan_in ** 0.5)
    w = jax.random.uniform(kw, (fan_in, fan_out), jnp.float32, -bound, bound)
    b = jax.random.uniform(kb, (1, fan_out), jnp.float32, -bound, bound)
    return w, b


if __name__ == "__main__":
    E = 32          # embedding_size
    N_SRC = 16      # source nodes
    N_DST = 8       # destination nodes
    N_EDGES = 64    # edges
    N_RATINGS = 5   # distinct ratings (epinions embedding rows)

    key = jax.random.PRNGKey(0)
    keys = jax.random.split(key, 16)

    feat_src_raw = jax.random.normal(keys[0], (N_SRC, E), jnp.float32)
    feat_dst_raw = jax.random.normal(keys[1], (N_DST, E), jnp.float32)
    epinions = jax.random.normal(keys[2], (N_RATINGS, E), jnp.float32)
    edge_src = jax.random.randint(keys[3], (N_EDGES,), 0, N_SRC, jnp.int32)
    edge_dst = jax.random.randint(keys[4], (N_EDGES,), 0, N_DST, jnp.int32)
    edge_rating = jax.random.randint(keys[5], (N_EDGES,), 0, N_RATINGS, jnp.int32)

    params = {}
    params["w_src"], params["b_src"] = _init_linear(keys[6], E, E)
    params["w_dst"], params["b_dst"] = _init_linear(keys[7], E, E)
    params["w_epi"], params["b_epi"] = _init_linear(keys[8], E, E)
    params["w_comb"], params["b_comb"] = _init_linear(keys[9], E, E)
    params["att_w_src"], params["att_b_src"] = _init_linear(keys[10], E, E)
    params["att_w_dst"], params["att_b_dst"] = _init_linear(keys[11], E, E)
    params["att_w1"], params["att_b1"] = _init_linear(keys[12], E, E)
    params["att_w2"], params["att_b2"] = _init_linear(keys[13], E, 1)
    params["w_out"], params["b_out"] = _init_linear(keys[14], E, E)

    forward = build_forward(params, edge_src, edge_dst, edge_rating,
                            N_SRC, N_DST, N_RATINGS, E)

    out = forward(feat_src_raw, feat_dst_raw, epinions)
    out = jax.block_until_ready(out)

    ref = reference_forward(feat_src_raw, feat_dst_raw, epinions,
                            edge_src, edge_dst, edge_rating, params, N_DST)
    ref = jax.block_until_ready(ref)

    assert out.shape == (N_DST, E)
    max_err = float(jnp.max(jnp.abs(out - ref)))
    # tolerance covers bf16 rounding of the gathered features / segment-sum
    # payload plus the approx reciprocal (expected ~few e-3 absolute)
    assert max_err < 2e-2, f"mismatch vs reference: {max_err}"
    print("KERNEL_OK")
</pallas_src>

<mosaic_0001>
module attributes {stable_mosaic.version = 11 : i64} {
  func.func @aggregation_kernel(%arg0: memref<16x128xf32, #tpu.memory_space<vmem>>, %arg1: memref<8x128xf32, #tpu.memory_space<vmem>>, %arg2: memref<8x128xf32, #tpu.memory_space<vmem>>, %arg3: memref<64x16xbf16, #tpu.memory_space<vmem>>, %arg4: memref<64x8xbf16, #tpu.memory_space<vmem>>, %arg5: memref<64x8xbf16, #tpu.memory_space<vmem>>, %arg6: memref<8x128x128xf32, #tpu.memory_space<vmem>>, %arg7: memref<9x128xf32, #tpu.memory_space<vmem>>, %arg8: memref<8x128xf32, #tpu.memory_space<vmem>>) attributes {dimension_semantics = [], scalar_prefetch = 0 : i64, scratch_operands = 0 : i64, tpu.core_type = #tpu.core_type<tc>} {
    %c0 = arith.constant 0 : index
    %c0_0 = arith.constant 0 : index
    %0 = vector.load %arg7[%c0, %c0_0] : memref<9x128xf32, #tpu.memory_space<vmem>>, vector<9x128xf32>
    %c0_1 = arith.constant 0 : index
    %c0_2 = arith.constant 0 : index
    %1 = vector.load %arg5[%c0_1, %c0_2] : memref<64x8xbf16, #tpu.memory_space<vmem>>, vector<64x8xbf16>
    %2 = arith.extf %1 : vector<64x8xbf16> to vector<64x8xf32>
    %c0_3 = arith.constant 0 : index
    %c0_4 = arith.constant 0 : index
    %3 = vector.load %arg0[%c0_3, %c0_4] : memref<16x128xf32, #tpu.memory_space<vmem>>, vector<16x128xf32>
    %c0_5 = arith.constant 0 : index
    %c0_6 = arith.constant 0 : index
    %c0_7 = arith.constant 0 : index
    %4 = vector.load %arg6[%c0_5, %c0_6, %c0_7] : memref<8x128x128xf32, #tpu.memory_space<vmem>>, vector<1x128x128xf32>
    %5 = vector.shape_cast %4 : vector<1x128x128xf32> to vector<128x128xf32>
    %cst = arith.constant dense<0.000000e+00> : vector<16x128xf32>
    %6 = tpu.matmul %3, %5, %cst {dimension_numbers = #tpu.dot_dimension_numbers<[1], [0], [0], [1], [0, 0, 1, 1], [], []>} : vector<16x128xf32>, vector<128x128xf32>, vector<16x128xf32> -> vector<16x128xf32>
    %7 = vector.extract_strided_slice %0 {offsets = [0, 0], sizes = [1, 128], strides = [1, 1]} : vector<9x128xf32> to vector<1x128xf32>
    %8 = vector.broadcast %7 : vector<1x128xf32> to vector<16x128xf32>
    %9 = arith.addf %6, %8 : vector<16x128xf32>
    %c0_8 = arith.constant 0 : index
    %c0_9 = arith.constant 0 : index
    %10 = vector.load %arg1[%c0_8, %c0_9] : memref<8x128xf32, #tpu.memory_space<vmem>>, vector<8x128xf32>
    %c1 = arith.constant 1 : index
    %c0_10 = arith.constant 0 : index
    %c0_11 = arith.constant 0 : index
    %11 = vector.load %arg6[%c1, %c0_10, %c0_11] : memref<8x128x128xf32, #tpu.memory_space<vmem>>, vector<1x128x128xf32>
    %12 = vector.shape_cast %11 : vector<1x128x128xf32> to vector<128x128xf32>
    %cst_12 = arith.constant dense<0.000000e+00> : vector<8x128xf32>
    %13 = tpu.matmul %10, %12, %cst_12 {dimension_numbers = #tpu.dot_dimension_numbers<[1], [0], [0], [1], [0, 0, 1, 1], [], []>} : vector<8x128xf32>, vector<128x128xf32>, vector<8x128xf32> -> vector<8x128xf32>
    %14 = vector.extract_strided_slice %0 {offsets = [1, 0], sizes = [1, 128], strides = [1, 1]} : vector<9x128xf32> to vector<1x128xf32>
    %15 = vector.broadcast %14 : vector<1x128xf32> to vector<8x128xf32>
    %16 = arith.addf %13, %15 : vector<8x128xf32>
    %c0_13 = arith.constant 0 : index
    %c0_14 = arith.constant 0 : index
    %17 = vector.load %arg2[%c0_13, %c0_14] : memref<8x128xf32, #tpu.memory_space<vmem>>, vector<8x128xf32>
    %c2 = arith.constant 2 : index
    %c0_15 = arith.constant 0 : index
    %c0_16 = arith.constant 0 : index
    %18 = vector.load %arg6[%c2, %c0_15, %c0_16] : memref<8x128x128xf32, #tpu.memory_space<vmem>>, vector<1x128x128xf32>
    %19 = vector.shape_cast %18 : vector<1x128x128xf32> to vector<128x128xf32>
    %cst_17 = arith.constant dense<0.000000e+00> : vector<8x128xf32>
    %20 = tpu.matmul %17, %19, %cst_17 {dimension_numbers = #tpu.dot_dimension_numbers<[1], [0], [0], [1], [0, 0, 1, 1], [], []>} : vector<8x128xf32>, vector<128x128xf32>, vector<8x128xf32> -> vector<8x128xf32>
    %21 = vector.extract_strided_slice %0 {offsets = [2, 0], sizes = [1, 128], strides = [1, 1]} : vector<9x128xf32> to vector<1x128xf32>
    %22 = vector.broadcast %21 : vector<1x128xf32> to vector<8x128xf32>
    %23 = arith.addf %20, %22 : vector<8x128xf32>
    %c0_18 = arith.constant 0 : index
    %c0_19 = arith.constant 0 : index
    %24 = vector.load %arg3[%c0_18, %c0_19] : memref<64x16xbf16, #tpu.memory_space<vmem>>, vector<64x16xbf16>
    %25 = arith.truncf %9 : vector<16x128xf32> to vector<16x128xbf16>
    %cst_20 = arith.constant dense<0.000000e+00> : vector<64x128xf32>
    %26 = tpu.matmul %24, %25, %cst_20 {dimension_numbers = #tpu.dot_dimension_numbers<[1], [0], [0], [1], [0, 0, 1, 1], [], []>} : vector<64x16xbf16>, vector<16x128xbf16>, vector<64x128xf32> -> vector<64x128xf32>
    %c0_21 = arith.constant 0 : index
    %c0_22 = arith.constant 0 : index
    %27 = vector.load %arg4[%c0_21, %c0_22] : memref<64x8xbf16, #tpu.memory_space<vmem>>, vector<64x8xbf16>
    %28 = arith.truncf %23 : vector<8x128xf32> to vector<8x128xbf16>
    %cst_23 = arith.constant dense<0.000000e+00> : vector<64x128xf32>
    %29 = tpu.matmul %27, %28, %cst_23 {dimension_numbers = #tpu.dot_dimension_numbers<[1], [0], [0], [1], [0, 0, 1, 1], [], []>} : vector<64x8xbf16>, vector<8x128xbf16>, vector<64x128xf32> -> vector<64x128xf32>
    %30 = arith.addf %26, %29 : vector<64x128xf32>
    %cst_24 = arith.constant 0.000000e+00 : f32
    %31 = vector.broadcast %cst_24 : f32 to vector<64x128xf32>
    %32 = arith.cmpf ogt, %30, %31 : vector<64x128xf32>
    %cst_25 = arith.constant 0.00999999977 : f32
    %33 = vector.broadcast %cst_25 : f32 to vector<64x128xf32>
    %34 = arith.mulf %33, %30 : vector<64x128xf32>
    %35 = arith.select %32, %30, %34 : vector<64x128xi1>, vector<64x128xf32>
    %c3 = arith.constant 3 : index
    %c0_26 = arith.constant 0 : index
    %c0_27 = arith.constant 0 : index
    %36 = vector.load %arg6[%c3, %c0_26, %c0_27] : memref<8x128x128xf32, #tpu.memory_space<vmem>>, vector<1x128x128xf32>
    %37 = vector.shape_cast %36 : vector<1x128x128xf32> to vector<128x128xf32>
    %cst_28 = arith.constant dense<0.000000e+00> : vector<64x128xf32>
    %38 = tpu.matmul %35, %37, %cst_28 {dimension_numbers = #tpu.dot_dimension_numbers<[1], [0], [0], [1], [0, 0, 1, 1], [], []>} : vector<64x128xf32>, vector<128x128xf32>, vector<64x128xf32> -> vector<64x128xf32>
    %39 = vector.extract_strided_slice %0 {offsets = [3, 0], sizes = [1, 128], strides = [1, 1]} : vector<9x128xf32> to vector<1x128xf32>
    %40 = vector.broadcast %39 : vector<1x128xf32> to vector<64x128xf32>
    %41 = arith.addf %38, %40 : vector<64x128xf32>
    %cst_29 = arith.constant 0.000000e+00 : f32
    %42 = vector.broadcast %cst_29 : f32 to vector<64x128xf32>
    %43 = arith.cmpf ogt, %41, %42 : vector<64x128xf32>
    %cst_30 = arith.constant 0.00999999977 : f32
    %44 = vector.broadcast %cst_30 : f32 to vector<64x128xf32>
    %45 = arith.mulf %44, %41 : vector<64x128xf32>
    %46 = arith.select %43, %41, %45 : vector<64x128xi1>, vector<64x128xf32>
    %c4 = arith.constant 4 : index
    %c0_31 = arith.constant 0 : index
    %c0_32 = arith.constant 0 : index
    %47 = vector.load %arg6[%c4, %c0_31, %c0_32] : memref<8x128x128xf32, #tpu.memory_space<vmem>>, vector<1x128x128xf32>
    %48 = vector.shape_cast %47 : vector<1x128x128xf32> to vector<128x128xf32>
    %cst_33 = arith.constant dense<0.000000e+00> : vector<64x128xf32>
    %49 = tpu.matmul %46, %48, %cst_33 {dimension_numbers = #tpu.dot_dimension_numbers<[1], [0], [0], [1], [0, 0, 1, 1], [], []>} : vector<64x128xf32>, vector<128x128xf32>, vector<64x128xf32> -> vector<64x128xf32>
    %50 = vector.extract_strided_slice %0 {offsets = [4, 0], sizes = [1, 128], strides = [1, 1]} : vector<9x128xf32> to vector<1x128xf32>
    %51 = vector.broadcast %50 : vector<1x128xf32> to vector<64x128xf32>
    %52 = arith.addf %49, %51 : vector<64x128xf32>
    %c5 = arith.constant 5 : index
    %c0_34 = arith.constant 0 : index
    %c0_35 = arith.constant 0 : index
    %53 = vector.load %arg6[%c5, %c0_34, %c0_35] : memref<8x128x128xf32, #tpu.memory_space<vmem>>, vector<1x128x128xf32>
    %54 = vector.shape_cast %53 : vector<1x128x128xf32> to vector<128x128xf32>
    %cst_36 = arith.constant dense<0.000000e+00> : vector<8x128xf32>
    %55 = tpu.matmul %16, %54, %cst_36 {dimension_numbers = #tpu.dot_dimension_numbers<[1], [0], [0], [1], [0, 0, 1, 1], [], []>} : vector<8x128xf32>, vector<128x128xf32>, vector<8x128xf32> -> vector<8x128xf32>
    %56 = vector.extract_strided_slice %0 {offsets = [5, 0], sizes = [1, 128], strides = [1, 1]} : vector<9x128xf32> to vector<1x128xf32>
    %57 = vector.broadcast %56 : vector<1x128xf32> to vector<8x128xf32>
    %58 = arith.addf %55, %57 : vector<8x128xf32>
    %59 = arith.truncf %58 : vector<8x128xf32> to vector<8x128xbf16>
    %cst_37 = arith.constant dense<0.000000e+00> : vector<64x128xf32>
    %60 = tpu.matmul %1, %59, %cst_37 {dimension_numbers = #tpu.dot_dimension_numbers<[1], [0], [0], [1], [0, 0, 1, 1], [], []>} : vector<64x8xbf16>, vector<8x128xbf16>, vector<64x128xf32> -> vector<64x128xf32>
    %61 = arith.addf %52, %60 : vector<64x128xf32>
    %cst_38 = arith.constant 0.000000e+00 : f32
    %62 = vector.broadcast %cst_38 : f32 to vector<64x128xf32>
    %63 = arith.cmpf ogt, %61, %62 : vector<64x128xf32>
    %cst_39 = arith.constant 0.00999999977 : f32
    %64 = vector.broadcast %cst_39 : f32 to vector<64x128xf32>
    %65 = arith.mulf %64, %61 : vector<64x128xf32>
    %66 = arith.select %63, %61, %65 : vector<64x128xi1>, vector<64x128xf32>
    %c6 = arith.constant 6 : index
    %c0_40 = arith.constant 0 : index
    %c0_41 = arith.constant 0 : index
    %67 = vector.load %arg6[%c6, %c0_40, %c0_41] : memref<8x128x128xf32, #tpu.memory_space<vmem>>, vector<1x128x128xf32>
    %68 = vector.shape_cast %67 : vector<1x128x128xf32> to vector<128x128xf32>
    %cst_42 = arith.constant dense<0.000000e+00> : vector<64x128xf32>
    %69 = tpu.matmul %66, %68, %cst_42 {dimension_numbers = #tpu.dot_dimension_numbers<[1], [0], [0], [1], [0, 0, 1, 1], [], []>} : vector<64x128xf32>, vector<128x128xf32>, vector<64x128xf32> -> vector<64x128xf32>
    %70 = vector.extract_strided_slice %0 {offsets = [6, 0], sizes = [1, 128], strides = [1, 1]} : vector<9x128xf32> to vector<1x128xf32>
    %71 = vector.broadcast %70 : vector<1x128xf32> to vector<64x128xf32>
    %72 = arith.addf %69, %71 : vector<64x128xf32>
    %cst_43 = arith.constant 0.000000e+00 : f32
    %73 = vector.broadcast %cst_43 : f32 to vector<64x128xf32>
    %74 = arith.cmpf ogt, %72, %73 : vector<64x128xf32>
    %cst_44 = arith.constant 0.00999999977 : f32
    %75 = vector.broadcast %cst_44 : f32 to vector<64x128xf32>
    %76 = arith.mulf %75, %72 : vector<64x128xf32>
    %77 = arith.select %74, %72, %76 : vector<64x128xi1>, vector<64x128xf32>
    %78 = vector.extract_strided_slice %0 {offsets = [8, 0], sizes = [1, 128], strides = [1, 1]} : vector<9x128xf32> to vector<1x128xf32>
    %79 = vector.broadcast %78 : vector<1x128xf32> to vector<64x128xf32>
    %80 = arith.mulf %77, %79 : vector<64x128xf32>
    %cst_45 = arith.constant dense<0.000000e+00> : vector<64xf32>
    %81 = vector.multi_reduction <add>, %80, %cst_45 [1] : vector<64x128xf32> to vector<64xf32>
    %82 = vector.shape_cast %81 : vector<64xf32> to vector<64x1xf32>
    %cst_46 = arith.constant 0.000000e+00 : f32
    %83 = vector.broadcast %cst_46 : f32 to vector<64x8xf32>
    %84 = arith.cmpf ogt, %2, %83 : vector<64x8xf32>
    %cst_47 = arith.constant -1.000000e+30 : f32
    %85 = vector.shape_cast %82 : vector<64x1xf32> to vector<64x1xf32>
    %86 = vector.broadcast %85 : vector<64x1xf32> to vector<64x8xf32>
    %87 = vector.broadcast %cst_47 : f32 to vector<64x8xf32>
    %88 = arith.select %84, %86, %87 : vector<64x8xi1>, vector<64x8xf32>
    %cst_48 = arith.constant dense<0xFF800000> : vector<8xf32>
    %89 = vector.multi_reduction <maximumf>, %88, %cst_48 [0] : vector<64x8xf32> to vector<8xf32>
    %90 = vector.shape_cast %89 : vector<8xf32> to vector<1x8xf32>
    %91 = vector.broadcast %90 : vector<1x8xf32> to vector<64x8xf32>
    %92 = arith.mulf %2, %91 : vector<64x8xf32>
    %cst_49 = arith.constant dense<0.000000e+00> : vector<64xf32>
    %93 = vector.multi_reduction <add>, %92, %cst_49 [1] : vector<64x8xf32> to vector<64xf32>
    %94 = vector.shape_cast %93 : vector<64xf32> to vector<64x1xf32>
    %95 = arith.subf %82, %94 : vector<64x1xf32>
    %96 = math.exp %95 : vector<64x1xf32>
    %97 = tpu.iota {dimensions = array<i32: 1>} : vector<1x128xi32>
    %c32_i32 = arith.constant 32 : i32
    %98 = vector.broadcast %c32_i32 : i32 to vector<1x128xi32>
    %99 = arith.cmpi eq, %97, %98 : vector<1x128xi32>
    %100 = arith.extui %99 : vector<1x128xi1> to vector<1x128xi32>
    %101 = arith.sitofp %100 : vector<1x128xi32> to vector<1x128xf32>
    %102 = vector.broadcast %101 : vector<1x128xf32> to vector<64x128xf32>
    %103 = arith.addf %46, %102 : vector<64x128xf32>
    %104 = vector.broadcast %96 : vector<64x1xf32> to vector<64x128xf32>
    %105 = arith.mulf %104, %103 : vector<64x128xf32>
    %106 = arith.truncf %105 : vector<64x128xf32> to vector<64x128xbf16>
    %cst_50 = arith.constant dense<0.000000e+00> : vector<8x128xf32>
    %107 = tpu.matmul %1, %106, %cst_50 {dimension_numbers = #tpu.dot_dimension_numbers<[0], [0], [1], [1], [0, 1, 1, 1], [], []>} : vector<64x8xbf16>, vector<64x128xbf16>, vector<8x128xf32> -> vector<8x128xf32>
    %108 = vector.broadcast %101 : vector<1x128xf32> to vector<8x128xf32>
    %109 = arith.mulf %107, %108 : vector<8x128xf32>
    %cst_51 = arith.constant dense<0.000000e+00> : vector<8xf32>
    %110 = vector.multi_reduction <add>, %109, %cst_51 [1] : vector<8x128xf32> to vector<8xf32>
    %111 = vector.shape_cast %110 : vector<8xf32> to vector<8x1xf32>
    %cst_52 = arith.constant 9.99999968E-21 : f32
    %112 = vector.broadcast %cst_52 : f32 to vector<8x1xf32>
    %113 = arith.maximumf %111, %112 : vector<8x1xf32>
    %114 = tpu.reciprocal %113 {approx = true} : vector<8x1xf32> -> vector<8x1xf32>
    %115 = vector.broadcast %114 : vector<8x1xf32> to vector<8x128xf32>
    %116 = arith.mulf %107, %115 : vector<8x128xf32>
    %c7 = arith.constant 7 : index
    %c0_53 = arith.constant 0 : index
    %c0_54 = arith.constant 0 : index
    %117 = vector.load %arg6[%c7, %c0_53, %c0_54] : memref<8x128x128xf32, #tpu.memory_space<vmem>>, vector<1x128x128xf32>
    %118 = vector.shape_cast %117 : vector<1x128x128xf32> to vector<128x128xf32>
    %cst_55 = arith.constant dense<0.000000e+00> : vector<8x128xf32>
    %119 = tpu.matmul %116, %118, %cst_55 {dimension_numbers = #tpu.dot_dimension_numbers<[1], [0], [0], [1], [0, 0, 1, 1], [], []>} : vector<8x128xf32>, vector<128x128xf32>, vector<8x128xf32> -> vector<8x128xf32>
    %120 = vector.extract_strided_slice %0 {offsets = [7, 0], sizes = [1, 128], strides = [1, 1]} : vector<9x128xf32> to vector<1x128xf32>
    %121 = vector.broadcast %120 : vector<1x128xf32> to vector<8x128xf32>
    %122 = arith.addf %119, %121 : vector<8x128xf32>
    %cst_56 = arith.constant 0.000000e+00 : f32
    %123 = vector.broadcast %cst_56 : f32 to vector<8x128xf32>
    %124 = arith.cmpf ogt, %122, %123 : vector<8x128xf32>
    %cst_57 = arith.constant 0.00999999977 : f32
    %125 = vector.broadcast %cst_57 : f32 to vector<8x128xf32>
    %126 = arith.mulf %125, %122 : vector<8x128xf32>
    %127 = arith.select %124, %122, %126 : vector<8x128xi1>, vector<8x128xf32>
    %c0_58 = arith.constant 0 : index
    %c0_59 = arith.constant 0 : index
    %128 = vector.load %arg8[%c0_58, %c0_59] : memref<8x128xf32, #tpu.memory_space<vmem>>, vector<8x128xf32>
    tpu.vector_store %arg8[%c0_58, %c0_59], %127 {strides = array<i32>} : memref<8x128xf32, #tpu.memory_space<vmem>>, vector<8x128xf32>,
    return
  }
}

</mosaic_0001>

<llo_original>
// kernel: forward.1
$region0: #{forward.1}
  #allocation0 [shape = 'u32[]', space=smem, size = 0x4, offset = 0x4, fixed_abs, tag = 'smem constant byte address 0x4 - core index']
  #allocation1 [shape = 'u32[144,128]{1,0:T(1,128)}', space=vmem, size = 0x12000, scoped, tag = 'internal scratch']
  %s0 = inlined_call_operand.vmem [shape: f32[16,128], index: 0, kind: input, shape index: {}]
  %s1 = inlined_call_operand.vmem [shape: f32[8,128], index: 1, kind: input, shape index: {}]
  %s2 = inlined_call_operand.vmem [shape: f32[8,128], index: 2, kind: input, shape index: {}]
  %s3 = inlined_call_operand.vmem [shape: bf16[64,16], index: 3, kind: input, shape index: {}]
  %s4 = inlined_call_operand.vmem [shape: bf16[64,8], index: 4, kind: input, shape index: {}]
  %s5 = inlined_call_operand.vmem [shape: bf16[64,8], index: 5, kind: input, shape index: {}]
  %s6 = inlined_call_operand.hbm [shape: f32[8,128,128], index: 6, kind: input, shape index: {}]
  %s7 = inlined_call_operand.hbm [shape: f32[9,128], index: 7, kind: input, shape index: {}]
  %s8 = inlined_call_operand.hbm [shape: f32[8,128], index: 8, kind: output, shape index: {}]
  %s9 = sld [smem:[#allocation0]]
  $region50: #{forward.1} parent=0
    _
  %s11 = ssub.s32 1, %s9
  %s12 = scalar_select 0, %s11, %s9
  $region1: #{forward.1} parent=0
    #allocation2 [shape = 'u8[524288]{0}', space=vmem, size = 0x80000, scoped, tag = 'input window, operand 6, single buffered']
    #allocation3 [shape = 's32[1]{0}', space=sflag, size = 0x4, scoped, tag = 'scoped memory for forward.1']
    #allocation4 [shape = 's32[1]{0}', space=sflag, size = 0x4, scoped, tag = 'scoped memory for forward.1']
    #allocation5 [shape = 'u8[8192]{0}', space=vmem, size = 0x2000, scoped, tag = 'input window, operand 7, single buffered']
    #allocation6 [shape = 's32[1]{0}', space=sflag, size = 0x4, scoped, tag = 'scoped memory for forward.1']
    #allocation7 [shape = 'u8[4096]{0}', space=vmem, size = 0x1000, scoped, tag = 'output window, operand 0, single buffered']
    %13 = vsyncpa [#allocation3], 0
    %14 = vsyncpa [#allocation6], 0
    %15 = vsyncpa [#allocation4], 0
    // Predicated region
    $region2: #{forward.1} parent=1 // pred_check
      _
    $region3: #{forward.1} parent=1 // pred_check_branch
      %17 = sbr.rel (0) target = $region5
    $region4: #{forward.1} parent=1 // pred_region
      _
    $region5: #{forward.1} parent=1 // pred_fallthru
      _
    // Predicated region
    $region6: #{forward.1} parent=1 // pred_check
      _
    $region7: #{forward.1} parent=1 // pred_check_branch
      %19 = sbr.rel (0) target = $region9
    $region8: #{forward.1} parent=1 // pred_region
      _
    $region9: #{forward.1} parent=1 // pred_fallthru
      _
    // Predicated region
    $region10: #{forward.1} parent=1 // pred_check
      _
    $region11: #{forward.1} parent=1 // pred_check_branch
      %21 = sbr.rel (0) target = $region13
    $region12: #{forward.1} parent=1 // pred_region
      _
    $region13: #{forward.1} parent=1 // pred_fallthru
      _
    // Predicated region
    $region14: #{forward.1} parent=1 // pred_check
      _
    $region15: #{forward.1} parent=1 // pred_check_branch
      %23 = sbr.rel (0) target = $region17
    $region16: #{forward.1} parent=1 // pred_region
      _
    $region17: #{forward.1} parent=1 // pred_fallthru
      _
    // Predicated region
    $region18: #{forward.1} parent=1 // pred_check
      _
    $region19: #{forward.1} parent=1 // pred_check_branch
      %25 = sbr.rel (0) target = $region21
    $region20: #{forward.1} parent=1 // pred_region
      _
    $region21: #{forward.1} parent=1 // pred_fallthru
      _
    // Predicated region
    $region22: #{forward.1} parent=1 // pred_check
      _
    $region23: #{forward.1} parent=1 // pred_check_branch
      %27 = sbr.rel (0) target = $region25
    $region24: #{forward.1} parent=1 // pred_region
      _
    $region25: #{forward.1} parent=1 // pred_fallthru
      _
    // Predicated region
    $region26: #{forward.1} parent=1 // pred_check
      _
    $region27: #{forward.1} parent=1 // pred_check_branch
      %29 = sbr.rel (0) target = $region29
    $region28: #{forward.1} parent=1 // pred_region
      %s31 = ssub.s32 16384, 16384
      %32 = vsyncadd [#allocation3], %s31
      %s33 = sshll.u32 [#allocation2], 4
      %s34 = int_to_ptr.vmem [resolvable:$true] %s33
      %39 = dma.hbm_to_vmem [thread:$0]  %s6, 16384, %s34, [#allocation3], 128, 128, 8
    $region29: #{forward.1} parent=1 // pred_fallthru
      _
    // Predicated region
    $region30: #{forward.1} parent=1 // pred_check
      _
    $region31: #{forward.1} parent=1 // pred_check_branch
      %41 = sbr.rel (0) target = $region33
    $region32: #{forward.1} parent=1 // pred_region
      %s43 = ssub.s32 256, 256
      %44 = vsyncadd [#allocation6], %s43
      %s45 = sshll.u32 [#allocation5], 4
      %s46 = int_to_ptr.vmem [resolvable:$true] %s45
      %51 = dma.hbm_to_vmem [thread:$0]  %s7, 256, %s46, [#allocation6], 128, 128, 8
    $region33: #{forward.1} parent=1 // pred_fallthru
      _
    // Predicated region
    $region34: #{forward.1} parent=1 // pred_check
      _
    $region35: #{forward.1} parent=1 // pred_check_branch
      %53 = sbr.rel (0) target = $region37
    $region36: #{forward.1} parent=1 // pred_region
      %54 = dma.done [#allocation3], 16384
    $region37: #{forward.1} parent=1 // pred_fallthru
      _
    // Predicated region
    $region38: #{forward.1} parent=1 // pred_check
      _
    $region39: #{forward.1} parent=1 // pred_check_branch
      %56 = sbr.rel (0) target = $region41
    $region40: #{forward.1} parent=1 // pred_region
      %57 = dma.done [#allocation6], 256
    $region41: #{forward.1} parent=1 // pred_fallthru
      _
    %v59 = vld [vmem:[#allocation5] sm:$0xff]
    %v60 = vld [vmem:[#allocation5 + $0x8] sm:$0x1]
    %v61 = vld [vmem:[%s5] sm:$0xf]
    %v62 = vld [vmem:[%s5 + $0x4] sm:$0xf]
    %v63 = vld [vmem:[%s5 + $0x8] sm:$0xf]
    %v64 = vld [vmem:[%s5 + $0xc] sm:$0xf]
    %v65 = vld [vmem:[%s5 + $0x10] sm:$0xf]
    %v66 = vld [vmem:[%s5 + $0x14] sm:$0xf]
    %v67 = vld [vmem:[%s5 + $0x18] sm:$0xf]
    %v68 = vld [vmem:[%s5 + $0x1c] sm:$0xf]
    %v69 = vunpack.c.l.bf16 %v61
    %v70 = vunpack.c.l.bf16 %v62
    %v71 = vunpack.c.l.bf16 %v63
    %v72 = vunpack.c.l.bf16 %v64
    %v73 = vunpack.c.l.bf16 %v65
    %v74 = vunpack.c.l.bf16 %v66
    %v75 = vunpack.c.l.bf16 %v67
    %v76 = vunpack.c.l.bf16 %v68
    %v77 = vld [vmem:[%s0] sm:$0xff]
    %v78 = vld [vmem:[%s0 + $0x8] sm:$0xff]
    %v79 = vld [vmem:[#allocation2] sm:$0xff]
    %v80 = vld [vmem:[#allocation2 + $0x8] sm:$0xff]
    %v81 = vld [vmem:[#allocation2 + $0x10] sm:$0xff]
    %v82 = vld [vmem:[#allocation2 + $0x18] sm:$0xff]
    %v83 = vld [vmem:[#allocation2 + $0x20] sm:$0xff]
    %v84 = vld [vmem:[#allocation2 + $0x28] sm:$0xff]
    %v85 = vld [vmem:[#allocation2 + $0x30] sm:$0xff]
    %v86 = vld [vmem:[#allocation2 + $0x38] sm:$0xff]
    %v87 = vld [vmem:[#allocation2 + $0x40] sm:$0xff]
    %v88 = vld [vmem:[#allocation2 + $0x48] sm:$0xff]
    %v89 = vld [vmem:[#allocation2 + $0x50] sm:$0xff]
    %v90 = vld [vmem:[#allocation2 + $0x58] sm:$0xff]
    %v91 = vld [vmem:[#allocation2 + $0x60] sm:$0xff]
    %v92 = vld [vmem:[#allocation2 + $0x68] sm:$0xff]
    %v93 = vld [vmem:[#allocation2 + $0x70] sm:$0xff]
    %v94 = vld [vmem:[#allocation2 + $0x78] sm:$0xff]
    %v95 = vlaneseq
    %v96 = vshrl.u32 %v95, 7
    %v97 = vsub.s32 0, %v96
    %v98 = vrot.slane %v59, %v97
    %99 = vmatprep.subr.mxu0 0.0
    %100 = vmatpush1.msra.mxu0 %v79
    %101 = vmatprep.subr.mxu0 0.0
    %102 = vmatpush1.msra.mxu0 %v80
    %103 = vmatprep.subr.mxu0 0.0
    %104 = vmatpush1.msra.mxu0 %v81
    %105 = vmatprep.subr.mxu0 0.0
    %106 = vmatpush1.msra.mxu0 %v82
    %107 = vmatprep.subr.mxu0 0.0
    %108 = vmatpush1.msra.mxu0 %v83
    %109 = vmatprep.subr.mxu0 0.0
    %110 = vmatpush1.msra.mxu0 %v84
    %111 = vmatprep.subr.mxu0 0.0
    %112 = vmatpush1.msra.mxu0 %v85
    %113 = vmatprep.subr.mxu0 0.0
    %114 = vmatpush1.msra.mxu0 %v86
    %115 = vmatprep.subr.mxu0 0.0
    %116 = vmatpush1.msra.mxu0 %v87
    %117 = vmatprep.subr.mxu0 0.0
    %118 = vmatpush1.msra.mxu0 %v88
    %119 = vmatprep.subr.mxu0 0.0
    %120 = vmatpush1.msra.mxu0 %v89
    %121 = vmatprep.subr.mxu0 0.0
    %122 = vmatpush1.msra.mxu0 %v90
    %123 = vmatprep.subr.mxu0 0.0
    %124 = vmatpush1.msra.mxu0 %v91
    %125 = vmatprep.subr.mxu0 0.0
    %126 = vmatpush1.msra.mxu0 %v92
    %127 = vmatprep.subr.mxu0 0.0
    %128 = vmatpush1.msra.mxu0 %v93
    %129 = vmatprep.subr.mxu0 0.0
    %130 = vmatpush1.msra.mxu0 %v94
    %131 = vmatprep.subr.mxu0 0.0
    %132 = vmatpush1.msra.mxu0 0.0
    %133 = vmatprep.subr.mxu0 0.0
    %134 = vmatpush1.msra.mxu0 0.0
    %135 = vmatprep.subr.mxu0 0.0
    %136 = vmatpush1.msra.mxu0 0.0
    %137 = vmatprep.subr.mxu0 0.0
    %138 = vmatpush1.msra.mxu0 0.0
    %139 = vmatprep.subr.mxu0 0.0
    %140 = vmatpush1.msra.mxu0 0.0
    %141 = vmatprep.subr.mxu0 0.0
    %142 = vmatpush1.msra.mxu0 0.0
    %143 = vmatprep.subr.mxu0 0.0
    %144 = vmatpush1.msra.mxu0 0.0
    %145 = vmatprep.subr.mxu0 0.0
    %146 = vmatpush1.msra.mxu0 0.0
    %147 = vmatprep.subr.mxu0 0.0
    %148 = vmatpush1.msra.mxu0 0.0
    %149 = vmatprep.subr.mxu0 0.0
    %150 = vmatpush1.msra.mxu0 0.0
    %151 = vmatprep.subr.mxu0 0.0
    %152 = vmatpush1.msra.mxu0 0.0
    %153 = vmatprep.subr.mxu0 0.0
    %154 = vmatpush1.msra.mxu0 0.0
    %155 = vmatprep.subr.mxu0 0.0
    %156 = vmatpush1.msra.mxu0 0.0
    %157 = vmatprep.subr.mxu0 0.0
    %158 = vmatpush1.msra.mxu0 0.0
    %159 = vmatprep.subr.mxu0 0.0
    %160 = vmatpush1.msra.mxu0 0.0
    %161 = vmatprep.subr.mxu0 0.0
    %162 = vmatpush1.msra.mxu0 0.0
    %163 = vmatprep.mubr.f32.mxu0 0.0
    %164 = vmatmul.mubr.f32.gmra.mrb[0].mxu0 %v77
    %v165 = vpop.f32.mrb[0].mxu0
    %v166 = vadd.f32 %v98, %v165
    %v167 = vpop.f32.mrb[0].mxu0
    %168 = vmatprep.mubr.f32.mxu0 0.0
    %169 = vmatmul.mubr.f32.gmra.mrb[0].mxu0 %v78
    %v170 = vpop.f32.mrb[0].mxu0
    %v171 = vadd.f32 %v98, %v170
    %v172 = vpop.f32.mrb[0].mxu0
    %173 = vdwg.mxu0
    %v174 = vld [vmem:[%s1] sm:$0xff]
    %s175 = scalar_lea.vmem [#allocation2], 128
    %v176 = vld [vmem:[%s175] sm:$0xff]
    %v177 = vld [vmem:[%s175 + $0x8] sm:$0xff]
    %v178 = vld [vmem:[%s175 + $0x10] sm:$0xff]
    %v179 = vld [vmem:[%s175 + $0x18] sm:$0xff]
    %v180 = vld [vmem:[%s175 + $0x20] sm:$0xff]
    %v181 = vld [vmem:[%s175 + $0x28] sm:$0xff]
    %v182 = vld [vmem:[%s175 + $0x30] sm:$0xff]
    %v183 = vld [vmem:[%s175 + $0x38] sm:$0xff]
    %v184 = vld [vmem:[%s175 + $0x40] sm:$0xff]
    %v185 = vld [vmem:[%s175 + $0x48] sm:$0xff]
    %v186 = vld [vmem:[%s175 + $0x50] sm:$0xff]
    %v187 = vld [vmem:[%s175 + $0x58] sm:$0xff]
    %v188 = vld [vmem:[%s175 + $0x60] sm:$0xff]
    %v189 = vld [vmem:[%s175 + $0x68] sm:$0xff]
    %v190 = vld [vmem:[%s175 + $0x70] sm:$0xff]
    %v191 = vld [vmem:[%s175 + $0x78] sm:$0xff]
    %v192 = vlaneseq
    %v193 = vshrl.u32 %v192, 7
    %v194 = vsub.s32 1, %v193
    %v195 = vrot.slane %v59, %v194
    %196 = vmatprep.subr.mxu0 0.0
    %197 = vmatpush1.msra.mxu0 %v176
    %198 = vmatprep.subr.mxu0 0.0
    %199 = vmatpush1.msra.mxu0 %v177
    %200 = vmatprep.subr.mxu0 0.0
    %201 = vmatpush1.msra.mxu0 %v178
    %202 = vmatprep.subr.mxu0 0.0
    %203 = vmatpush1.msra.mxu0 %v179
    %204 = vmatprep.subr.mxu0 0.0
    %205 = vmatpush1.msra.mxu0 %v180
    %206 = vmatprep.subr.mxu0 0.0
    %207 = vmatpush1.msra.mxu0 %v181
    %208 = vmatprep.subr.mxu0 0.0
    %209 = vmatpush1.msra.mxu0 %v182
    %210 = vmatprep.subr.mxu0 0.0
    %211 = vmatpush1.msra.mxu0 %v183
    %212 = vmatprep.subr.mxu0 0.0
    %213 = vmatpush1.msra.mxu0 %v184
    %214 = vmatprep.subr.mxu0 0.0
    %215 = vmatpush1.msra.mxu0 %v185
    %216 = vmatprep.subr.mxu0 0.0
    %217 = vmatpush1.msra.mxu0 %v186
    %218 = vmatprep.subr.mxu0 0.0
    %219 = vmatpush1.msra.mxu0 %v187
    %220 = vmatprep.subr.mxu0 0.0
    %221 = vmatpush1.msra.mxu0 %v188
    %222 = vmatprep.subr.mxu0 0.0
    %223 = vmatpush1.msra.mxu0 %v189
    %224 = vmatprep.subr.mxu0 0.0
    %225 = vmatpush1.msra.mxu0 %v190
    %226 = vmatprep.subr.mxu0 0.0
    %227 = vmatpush1.msra.mxu0 %v191
    %228 = vmatprep.subr.mxu0 0.0
    %229 = vmatpush1.msra.mxu0 0.0
    %230 = vmatprep.subr.mxu0 0.0
    %231 = vmatpush1.msra.mxu0 0.0
    %232 = vmatprep.subr.mxu0 0.0
    %233 = vmatpush1.msra.mxu0 0.0
    %234 = vmatprep.subr.mxu0 0.0
    %235 = vmatpush1.msra.mxu0 0.0
    %236 = vmatprep.subr.mxu0 0.0
    %237 = vmatpush1.msra.mxu0 0.0
    %238 = vmatprep.subr.mxu0 0.0
    %239 = vmatpush1.msra.mxu0 0.0
    %240 = vmatprep.subr.mxu0 0.0
    %241 = vmatpush1.msra.mxu0 0.0
    %242 = vmatprep.subr.mxu0 0.0
    %243 = vmatpush1.msra.mxu0 0.0
    %244 = vmatprep.subr.mxu0 0.0
    %245 = vmatpush1.msra.mxu0 0.0
    %246 = vmatprep.subr.mxu0 0.0
    %247 = vmatpush1.msra.mxu0 0.0
    %248 = vmatprep.subr.mxu0 0.0
    %249 = vmatpush1.msra.mxu0 0.0
    %250 = vmatprep.subr.mxu0 0.0
    %251 = vmatpush1.msra.mxu0 0.0
    %252 = vmatprep.subr.mxu0 0.0
    %253 = vmatpush1.msra.mxu0 0.0
    %254 = vmatprep.subr.mxu0 0.0
    %255 = vmatpush1.msra.mxu0 0.0
    %256 = vmatprep.subr.mxu0 0.0
    %257 = vmatpush1.msra.mxu0 0.0
    %258 = vmatprep.subr.mxu0 0.0
    %259 = vmatpush1.msra.mxu0 0.0
    %260 = vmatprep.mubr.f32.mxu0 0.0
    %261 = vmatmul.mubr.f32.gmra.mrb[0].mxu0 %v174
    %v262 = vpop.f32.mrb[0].mxu0
    %v263 = vadd.f32 %v195, %v262
    %v264 = vpop.f32.mrb[0].mxu0
    %265 = vdwg.mxu0
    %v266 = vld [vmem:[%s2] sm:$0xff]
    %s267 = scalar_lea.vmem [#allocation2], 256
    %v268 = vld [vmem:[%s267] sm:$0xff]
    %v269 = vld [vmem:[%s267 + $0x8] sm:$0xff]
    %v270 = vld [vmem:[%s267 + $0x10] sm:$0xff]
    %v271 = vld [vmem:[%s267 + $0x18] sm:$0xff]
    %v272 = vld [vmem:[%s267 + $0x20] sm:$0xff]
    %v273 = vld [vmem:[%s267 + $0x28] sm:$0xff]
    %v274 = vld [vmem:[%s267 + $0x30] sm:$0xff]
    %v275 = vld [vmem:[%s267 + $0x38] sm:$0xff]
    %v276 = vld [vmem:[%s267 + $0x40] sm:$0xff]
    %v277 = vld [vmem:[%s267 + $0x48] sm:$0xff]
    %v278 = vld [vmem:[%s267 + $0x50] sm:$0xff]
    %v279 = vld [vmem:[%s267 + $0x58] sm:$0xff]
    %v280 = vld [vmem:[%s267 + $0x60] sm:$0xff]
    %v281 = vld [vmem:[%s267 + $0x68] sm:$0xff]
    %v282 = vld [vmem:[%s267 + $0x70] sm:$0xff]
    %v283 = vld [vmem:[%s267 + $0x78] sm:$0xff]
    %v284 = vlaneseq
    %v285 = vshrl.u32 %v284, 7
    %v286 = vsub.s32 2, %v285
    %v287 = vrot.slane %v59, %v286
    %288 = vmatprep.subr.mxu0 0.0
    %289 = vmatpush1.msra.mxu0 %v268
    %290 = vmatprep.subr.mxu0 0.0
    %291 = vmatpush1.msra.mxu0 %v269
    %292 = vmatprep.subr.mxu0 0.0
    %293 = vmatpush1.msra.mxu0 %v270
    %294 = vmatprep.subr.mxu0 0.0
    %295 = vmatpush1.msra.mxu0 %v271
    %296 = vmatprep.subr.mxu0 0.0
    %297 = vmatpush1.msra.mxu0 %v272
    %298 = vmatprep.subr.mxu0 0.0
    %299 = vmatpush1.msra.mxu0 %v273
    %300 = vmatprep.subr.mxu0 0.0
    %301 = vmatpush1.msra.mxu0 %v274
    %302 = vmatprep.subr.mxu0 0.0
    %303 = vmatpush1.msra.mxu0 %v275
    %304 = vmatprep.subr.mxu0 0.0
    %305 = vmatpush1.msra.mxu0 %v276
    %306 = vmatprep.subr.mxu0 0.0
    %307 = vmatpush1.msra.mxu0 %v277
    %308 = vmatprep.subr.mxu0 0.0
    %309 = vmatpush1.msra.mxu0 %v278
    %310 = vmatprep.subr.mxu0 0.0
    %311 = vmatpush1.msra.mxu0 %v279
    %312 = vmatprep.subr.mxu0 0.0
    %313 = vmatpush1.msra.mxu0 %v280
    %314 = vmatprep.subr.mxu0 0.0
    %315 = vmatpush1.msra.mxu0 %v281
    %316 = vmatprep.subr.mxu0 0.0
    %317 = vmatpush1.msra.mxu0 %v282
    %318 = vmatprep.subr.mxu0 0.0
    %319 = vmatpush1.msra.mxu0 %v283
    %320 = vmatprep.subr.mxu0 0.0
    %321 = vmatpush1.msra.mxu0 0.0
    %322 = vmatprep.subr.mxu0 0.0
    %323 = vmatpush1.msra.mxu0 0.0
    %324 = vmatprep.subr.mxu0 0.0
    %325 = vmatpush1.msra.mxu0 0.0
    %326 = vmatprep.subr.mxu0 0.0
    %327 = vmatpush1.msra.mxu0 0.0
    %328 = vmatprep.subr.mxu0 0.0
    %329 = vmatpush1.msra.mxu0 0.0
    %330 = vmatprep.subr.mxu0 0.0
    %331 = vmatpush1.msra.mxu0 0.0
    %332 = vmatprep.subr.mxu0 0.0
    %333 = vmatpush1.msra.mxu0 0.0
    %334 = vmatprep.subr.mxu0 0.0
    %335 = vmatpush1.msra.mxu0 0.0
    %336 = vmatprep.subr.mxu0 0.0
    %337 = vmatpush1.msra.mxu0 0.0
    %338 = vmatprep.subr.mxu0 0.0
    %339 = vmatpush1.msra.mxu0 0.0
    %340 = vmatprep.subr.mxu0 0.0
    %341 = vmatpush1.msra.mxu0 0.0
    %342 = vmatprep.subr.mxu0 0.0
    %343 = vmatpush1.msra.mxu0 0.0
    %344 = vmatprep.subr.mxu0 0.0
    %345 = vmatpush1.msra.mxu0 0.0
    %346 = vmatprep.subr.mxu0 0.0
    %347 = vmatpush1.msra.mxu0 0.0
    %348 = vmatprep.subr.mxu0 0.0
    %349 = vmatpush1.msra.mxu0 0.0
    %350 = vmatprep.subr.mxu0 0.0
    %351 = vmatpush1.msra.mxu0 0.0
    %352 = vmatprep.mubr.f32.mxu0 0.0
    %353 = vmatmul.mubr.f32.gmra.mrb[0].mxu0 %v266
    %v354 = vpop.f32.mrb[0].mxu0
    %v355 = vadd.f32 %v287, %v354
    %v356 = vpop.f32.mrb[0].mxu0
    %357 = vdwg.mxu0
    %v358 = vld [vmem:[%s3] sm:$0xf]
    %v359 = vld [vmem:[%s3 + $0x4] sm:$0xf]
    %v360 = vld [vmem:[%s3 + $0x8] sm:$0xf]
    %v361 = vld [vmem:[%s3 + $0xc] sm:$0xf]
    %v362 = vld [vmem:[%s3 + $0x10] sm:$0xf]
    %v363 = vld [vmem:[%s3 + $0x14] sm:$0xf]
    %v364 = vld [vmem:[%s3 + $0x18] sm:$0xf]
    %v365 = vld [vmem:[%s3 + $0x1c] sm:$0xf]
    %v366 = vpack.c.bf16 %v171, %v166
    %v367 = vld [vmem:[%s4] sm:$0xf]
    %v368 = vld [vmem:[%s4 + $0x4] sm:$0xf]
    %v369 = vld [vmem:[%s4 + $0x8] sm:$0xf]
    %v370 = vld [vmem:[%s4 + $0xc] sm:$0xf]
    %v371 = vld [vmem:[%s4 + $0x10] sm:$0xf]
    %v372 = vld [vmem:[%s4 + $0x14] sm:$0xf]
    %v373 = vld [vmem:[%s4 + $0x18] sm:$0xf]
    %v374 = vld [vmem:[%s4 + $0x1c] sm:$0xf]
    %v375 = vpack.c.bf16 %v355, %v355
    %v384 = vunpack.c.l.b16 %v367
    %v385 = vunpack.c.l.b16 %v368
    %v386 = vunpack.c.l.b16 %v369
    %v387 = vunpack.c.l.b16 %v370
    %v388 = vunpack.c.l.b16 %v371
    %v389 = vunpack.c.l.b16 %v372
    %v390 = vunpack.c.l.b16 %v373
    %v391 = vunpack.c.l.b16 %v374
    %v392 = vpack.c.b16 %v385, %v384
    %v393 = vpack.c.b16 %v387, %v386
    %v394 = vpack.c.b16 %v389, %v388
    %v395 = vpack.c.b16 %v391, %v390
    %vm396 = vcmask 64512
    %v398 = vsel %vm396, %v392, 0
    %v401 = vsel %vm396, %v393, 0
    %v404 = vsel %vm396, %v394, 0
    %v407 = vsel %vm396, %v395, 0
    %vm409 = vcmask 1043456
    %v411 = vsel %vm409, %v375, 0
    %413 = vmatprep.subr.bf16.mxu0 0
    %414 = vmatpush1.bf16.msra.mxu0 %v411
    %415 = vmatprep.subr.bf16.mxu0 0
    %416 = vmatpush1.bf16.msra.mxu0 0
    %417 = vmatprep.subr.bf16.mxu0 0
    %418 = vmatpush1.bf16.msra.mxu0 0
    %419 = vmatprep.subr.bf16.mxu0 0
    %420 = vmatpush1.bf16.msra.mxu0 0
    %421 = vmatprep.subr.bf16.mxu0 0
    %422 = vmatpush1.bf16.msra.mxu0 0
    %423 = vmatprep.subr.bf16.mxu0 0
    %424 = vmatpush1.bf16.msra.mxu0 0
    %425 = vmatprep.subr.bf16.mxu0 0
    %426 = vmatpush1.bf16.msra.mxu0 0
    %427 = vmatprep.subr.bf16.mxu0 0
    %428 = vmatpush1.bf16.msra.mxu0 0
    %429 = vmatprep.subr.bf16.mxu0 0
    %430 = vmatpush1.bf16.msra.mxu0 0
    %431 = vmatprep.subr.bf16.mxu0 0
    %432 = vmatpush1.bf16.msra.mxu0 0
    %433 = vmatprep.subr.bf16.mxu0 0
    %434 = vmatpush1.bf16.msra.mxu0 0
    %435 = vmatprep.subr.bf16.mxu0 0
    %436 = vmatpush1.bf16.msra.mxu0 0
    %437 = vmatprep.subr.bf16.mxu0 0
    %438 = vmatpush1.bf16.msra.mxu0 0
    %439 = vmatprep.subr.bf16.mxu0 0
    %440 = vmatpush1.bf16.msra.mxu0 0
    %441 = vmatprep.subr.bf16.mxu0 0
    %442 = vmatpush1.bf16.msra.mxu0 0
    %443 = vmatprep.subr.bf16.mxu0 0
    %444 = vmatpush1.bf16.msra.mxu0 0
    %445 = vmatprep.mubr.bf16.mxu0 0
    %446 = vmatmul.mubr.bf16.gmra.mrb[0].mxu0 %v398
    %v447 = vpop.f32.mrb[0].mxu0
    %v448 = vadd.f32 0.0, %v447
    %v449 = vpop.f32.mrb[0].mxu0
    %v450 = vpop.f32.mrb[0].mxu0
    %v451 = vadd.f32 0.0, %v450
    %v452 = vpop.f32.mrb[0].mxu0
    %453 = vmatprep.mubr.bf16.mxu0 0
    %454 = vmatmul.mubr.bf16.gmra.mrb[0].mxu0 %v401
    %v455 = vpop.f32.mrb[0].mxu0
    %v456 = vadd.f32 0.0, %v455
    %v457 = vpop.f32.mrb[0].mxu0
    %v458 = vpop.f32.mrb[0].mxu0
    %v459 = vadd.f32 0.0, %v458
    %v460 = vpop.f32.mrb[0].mxu0
    %461 = vmatprep.mubr.bf16.mxu0 0
    %462 = vmatmul.mubr.bf16.gmra.mrb[0].mxu0 %v404
    %v463 = vpop.f32.mrb[0].mxu0
    %v464 = vadd.f32 0.0, %v463
    %v465 = vpop.f32.mrb[0].mxu0
    %v466 = vpop.f32.mrb[0].mxu0
    %v467 = vadd.f32 0.0, %v466
    %v468 = vpop.f32.mrb[0].mxu0
    %469 = vmatprep.mubr.bf16.mxu0 0
    %470 = vmatmul.mubr.bf16.gmra.mrb[0].mxu0 %v407
    %v471 = vpop.f32.mrb[0].mxu0
    %v472 = vadd.f32 0.0, %v471
    %v473 = vpop.f32.mrb[0].mxu0
    %v474 = vpop.f32.mrb[0].mxu0
    %v475 = vadd.f32 0.0, %v474
    %v476 = vpop.f32.mrb[0].mxu0
    %477 = vdwg.mxu0
    %v486 = vunpack.c.l.b16 %v358
    %v487 = vunpack.c.l.b16 %v359
    %v488 = vunpack.c.l.b16 %v360
    %v489 = vunpack.c.l.b16 %v361
    %v490 = vunpack.c.l.b16 %v362
    %v491 = vunpack.c.l.b16 %v363
    %v492 = vunpack.c.l.b16 %v364
    %v493 = vunpack.c.l.b16 %v365
    %v494 = vpack.c.b16 %v487, %v486
    %v495 = vpack.c.b16 %v489, %v488
    %v496 = vpack.c.b16 %v491, %v490
    %v497 = vpack.c.b16 %v493, %v492
    %vm498 = vcmask 130048
    %v500 = vsel %vm498, %v494, 0
    %v503 = vsel %vm498, %v495, 0
    %v506 = vsel %vm498, %v496, 0
    %v509 = vsel %vm498, %v497, 0
    %511 = vmatprep.subr.bf16.mxu0 0
    %512 = vmatpush1.bf16.msra.mxu0 %v366
    %513 = vmatprep.subr.bf16.mxu0 0
    %514 = vmatpush1.bf16.msra.mxu0 0
    %515 = vmatprep.subr.bf16.mxu0 0
    %516 = vmatpush1.bf16.msra.mxu0 0
    %517 = vmatprep.subr.bf16.mxu0 0
    %518 = vmatpush1.bf16.msra.mxu0 0
    %519 = vmatprep.subr.bf16.mxu0 0
    %520 = vmatpush1.bf16.msra.mxu0 0
    %521 = vmatprep.subr.bf16.mxu0 0
    %522 = vmatpush1.bf16.msra.mxu0 0
    %523 = vmatprep.subr.bf16.mxu0 0
    %524 = vmatpush1.bf16.msra.mxu0 0
    %525 = vmatprep.subr.bf16.mxu0 0
    %526 = vmatpush1.bf16.msra.mxu0 0
    %527 = vmatprep.subr.bf16.mxu0 0
    %528 = vmatpush1.bf16.msra.mxu0 0
    %529 = vmatprep.subr.bf16.mxu0 0
    %530 = vmatpush1.bf16.msra.mxu0 0
    %531 = vmatprep.subr.bf16.mxu0 0
    %532 = vmatpush1.bf16.msra.mxu0 0
    %533 = vmatprep.subr.bf16.mxu0 0
    %534 = vmatpush1.bf16.msra.mxu0 0
    %535 = vmatprep.subr.bf16.mxu0 0
    %536 = vmatpush1.bf16.msra.mxu0 0
    %537 = vmatprep.subr.bf16.mxu0 0
    %538 = vmatpush1.bf16.msra.mxu0 0
    %539 = vmatprep.subr.bf16.mxu0 0
    %540 = vmatpush1.bf16.msra.mxu0 0
    %541 = vmatprep.subr.bf16.mxu0 0
    %542 = vmatpush1.bf16.msra.mxu0 0
    %543 = vmatprep.mubr.bf16.mxu0 0
    %544 = vmatmul.mubr.bf16.gmra.mrb[0].mxu0 %v500
    %v545 = vpop.f32.mrb[0].mxu0
    %v546 = vadd.f32 %v448, %v545
    %v547 = vpop.f32.mrb[0].mxu0
    %v548 = vpop.f32.mrb[0].mxu0
    %v549 = vadd.f32 %v451, %v548
    %v550 = vpop.f32.mrb[0].mxu0
    %551 = vmatprep.mubr.bf16.mxu0 0
    %552 = vmatmul.mubr.bf16.gmra.mrb[0].mxu0 %v503
    %v553 = vpop.f32.mrb[0].mxu0
    %v554 = vadd.f32 %v456, %v553
    %v555 = vpop.f32.mrb[0].mxu0
    %v556 = vpop.f32.mrb[0].mxu0
    %v557 = vadd.f32 %v459, %v556
    %v558 = vpop.f32.mrb[0].mxu0
    %559 = vmatprep.mubr.bf16.mxu0 0
    %560 = vmatmul.mubr.bf16.gmra.mrb[0].mxu0 %v506
    %v561 = vpop.f32.mrb[0].mxu0
    %v562 = vadd.f32 %v464, %v561
    %v563 = vpop.f32.mrb[0].mxu0
    %v564 = vpop.f32.mrb[0].mxu0
    %v565 = vadd.f32 %v467, %v564
    %v566 = vpop.f32.mrb[0].mxu0
    %567 = vmatprep.mubr.bf16.mxu0 0
    %568 = vmatmul.mubr.bf16.gmra.mrb[0].mxu0 %v509
    %v569 = vpop.f32.mrb[0].mxu0
    %v570 = vadd.f32 %v472, %v569
    %v571 = vpop.f32.mrb[0].mxu0
    %v572 = vpop.f32.mrb[0].mxu0
    %v573 = vadd.f32 %v475, %v572
    %v574 = vpop.f32.mrb[0].mxu0
    %575 = vdwg.mxu0
    %vm576 = vcmp.gt.f32.partialorder %v546, 0.0
    %vm577 = vcmp.gt.f32.partialorder %v549, 0.0
    %vm578 = vcmp.gt.f32.partialorder %v554, 0.0
    %vm579 = vcmp.gt.f32.partialorder %v557, 0.0
    %vm580 = vcmp.gt.f32.partialorder %v562, 0.0
    %vm581 = vcmp.gt.f32.partialorder %v565, 0.0
    %vm582 = vcmp.gt.f32.partialorder %v570, 0.0
    %vm583 = vcmp.gt.f32.partialorder %v573, 0.0
    %v584 = vmul.f32 %v546, 0.01
    %v585 = vmul.f32 %v549, 0.01
    %v586 = vmul.f32 %v554, 0.01
    %v587 = vmul.f32 %v557, 0.01
    %v588 = vmul.f32 %v562, 0.01
    %v589 = vmul.f32 %v565, 0.01
    %v590 = vmul.f32 %v570, 0.01
    %v591 = vmul.f32 %v573, 0.01
    %v592 = vsel %vm576, %v546, %v584
    %v593 = vsel %vm577, %v549, %v585
    %v594 = vsel %vm578, %v554, %v586
    %v595 = vsel %vm579, %v557, %v587
    %v596 = vsel %vm580, %v562, %v588
    %v597 = vsel %vm581, %v565, %v589
    %v598 = vsel %vm582, %v570, %v590
    %v599 = vsel %vm583, %v573, %v591
    %s600 = scalar_lea.vmem [#allocation2], 384
    %v601 = vld [vmem:[%s600] sm:$0xff]
    %v602 = vld [vmem:[%s600 + $0x8] sm:$0xff]
    %v603 = vld [vmem:[%s600 + $0x10] sm:$0xff]
    %v604 = vld [vmem:[%s600 + $0x18] sm:$0xff]
    %v605 = vld [vmem:[%s600 + $0x20] sm:$0xff]
    %v606 = vld [vmem:[%s600 + $0x28] sm:$0xff]
    %v607 = vld [vmem:[%s600 + $0x30] sm:$0xff]
    %v608 = vld [vmem:[%s600 + $0x38] sm:$0xff]
    %v609 = vld [vmem:[%s600 + $0x40] sm:$0xff]
    %v610 = vld [vmem:[%s600 + $0x48] sm:$0xff]
    %v611 = vld [vmem:[%s600 + $0x50] sm:$0xff]
    %v612 = vld [vmem:[%s600 + $0x58] sm:$0xff]
    %v613 = vld [vmem:[%s600 + $0x60] sm:$0xff]
    %v614 = vld [vmem:[%s600 + $0x68] sm:$0xff]
    %v615 = vld [vmem:[%s600 + $0x70] sm:$0xff]
    %v616 = vld [vmem:[%s600 + $0x78] sm:$0xff]
    %v617 = vlaneseq
    %v618 = vshrl.u32 %v617, 7
    %v619 = vsub.s32 3, %v618
    %v620 = vrot.slane %v59, %v619
    %621 = vmatprep.subr.mxu0 0.0
    %622 = vmatpush1.msra.mxu0 %v601
    %623 = vmatprep.subr.mxu0 0.0
    %624 = vmatpush1.msra.mxu0 %v602
    %625 = vmatprep.subr.mxu0 0.0
    %626 = vmatpush1.msra.mxu0 %v603
    %627 = vmatprep.subr.mxu0 0.0
    %628 = vmatpush1.msra.mxu0 %v604
    %629 = vmatprep.subr.mxu0 0.0
    %630 = vmatpush1.msra.mxu0 %v605
    %631 = vmatprep.subr.mxu0 0.0
    %632 = vmatpush1.msra.mxu0 %v606
    %633 = vmatprep.subr.mxu0 0.0
    %634 = vmatpush1.msra.mxu0 %v607
    %635 = vmatprep.subr.mxu0 0.0
    %636 = vmatpush1.msra.mxu0 %v608
    %637 = vmatprep.subr.mxu0 0.0
    %638 = vmatpush1.msra.mxu0 %v609
    %639 = vmatprep.subr.mxu0 0.0
    %640 = vmatpush1.msra.mxu0 %v610
    %641 = vmatprep.subr.mxu0 0.0
    %642 = vmatpush1.msra.mxu0 %v611
    %643 = vmatprep.subr.mxu0 0.0
    %644 = vmatpush1.msra.mxu0 %v612
    %645 = vmatprep.subr.mxu0 0.0
    %646 = vmatpush1.msra.mxu0 %v613
    %647 = vmatprep.subr.mxu0 0.0
    %648 = vmatpush1.msra.mxu0 %v614
    %649 = vmatprep.subr.mxu0 0.0
    %650 = vmatpush1.msra.mxu0 %v615
    %651 = vmatprep.subr.mxu0 0.0
    %652 = vmatpush1.msra.mxu0 %v616
    %653 = vmatprep.subr.mxu0 0.0
    %654 = vmatpush1.msra.mxu0 0.0
    %655 = vmatprep.subr.mxu0 0.0
    %656 = vmatpush1.msra.mxu0 0.0
    %657 = vmatprep.subr.mxu0 0.0
    %658 = vmatpush1.msra.mxu0 0.0
    %659 = vmatprep.subr.mxu0 0.0
    %660 = vmatpush1.msra.mxu0 0.0
    %661 = vmatprep.subr.mxu0 0.0
    %662 = vmatpush1.msra.mxu0 0.0
    %663 = vmatprep.subr.mxu0 0.0
    %664 = vmatpush1.msra.mxu0 0.0
    %665 = vmatprep.subr.mxu0 0.0
    %666 = vmatpush1.msra.mxu0 0.0
    %667 = vmatprep.subr.mxu0 0.0
    %668 = vmatpush1.msra.mxu0 0.0
    %669 = vmatprep.subr.mxu0 0.0
    %670 = vmatpush1.msra.mxu0 0.0
    %671 = vmatprep.subr.mxu0 0.0
    %672 = vmatpush1.msra.mxu0 0.0
    %673 = vmatprep.subr.mxu0 0.0
    %674 = vmatpush1.msra.mxu0 0.0
    %675 = vmatprep.subr.mxu0 0.0
    %676 = vmatpush1.msra.mxu0 0.0
    %677 = vmatprep.subr.mxu0 0.0
    %678 = vmatpush1.msra.mxu0 0.0
    %679 = vmatprep.subr.mxu0 0.0
    %680 = vmatpush1.msra.mxu0 0.0
    %681 = vmatprep.subr.mxu0 0.0
    %682 = vmatpush1.msra.mxu0 0.0
    %683 = vmatprep.subr.mxu0 0.0
    %684 = vmatpush1.msra.mxu0 0.0
    %685 = vmatprep.mubr.f32.mxu0 0.0
    %686 = vmatmul.mubr.f32.gmra.mrb[0].mxu0 %v592
    %v687 = vpop.f32.mrb[0].mxu0
    %v688 = vadd.f32 %v620, %v687
    %v689 = vpop.f32.mrb[0].mxu0
    %690 = vmatprep.mubr.f32.mxu0 0.0
    %691 = vmatmul.mubr.f32.gmra.mrb[0].mxu0 %v593
    %v692 = vpop.f32.mrb[0].mxu0
    %v693 = vadd.f32 %v620, %v692
    %v694 = vpop.f32.mrb[0].mxu0
    %695 = vmatprep.mubr.f32.mxu0 0.0
    %696 = vmatmul.mubr.f32.gmra.mrb[0].mxu0 %v594
    %v697 = vpop.f32.mrb[0].mxu0
    %v698 = vadd.f32 %v620, %v697
    %v699 = vpop.f32.mrb[0].mxu0
    %700 = vmatprep.mubr.f32.mxu0 0.0
    %701 = vmatmul.mubr.f32.gmra.mrb[0].mxu0 %v595
    %v702 = vpop.f32.mrb[0].mxu0
    %v703 = vadd.f32 %v620, %v702
    %v704 = vpop.f32.mrb[0].mxu0
    %705 = vmatprep.mubr.f32.mxu0 0.0
    %706 = vmatmul.mubr.f32.gmra.mrb[0].mxu0 %v596
    %v707 = vpop.f32.mrb[0].mxu0
    %v708 = vadd.f32 %v620, %v707
    %v709 = vpop.f32.mrb[0].mxu0
    %710 = vmatprep.mubr.f32.mxu0 0.0
    %711 = vmatmul.mubr.f32.gmra.mrb[0].mxu0 %v597
    %v712 = vpop.f32.mrb[0].mxu0
    %v713 = vadd.f32 %v620, %v712
    %v714 = vpop.f32.mrb[0].mxu0
    %715 = vmatprep.mubr.f32.mxu0 0.0
    %716 = vmatmul.mubr.f32.gmra.mrb[0].mxu0 %v598
    %v717 = vpop.f32.mrb[0].mxu0
    %v718 = vadd.f32 %v620, %v717
    %v719 = vpop.f32.mrb[0].mxu0
    %720 = vmatprep.mubr.f32.mxu0 0.0
    %721 = vmatmul.mubr.f32.gmra.mrb[0].mxu0 %v599
    %v722 = vpop.f32.mrb[0].mxu0
    %v723 = vadd.f32 %v620, %v722
    %v724 = vpop.f32.mrb[0].mxu0
    %725 = vdwg.mxu0
    %vm726 = vcmp.gt.f32.partialorder %v688, 0.0
    %vm727 = vcmp.gt.f32.partialorder %v693, 0.0
    %vm728 = vcmp.gt.f32.partialorder %v698, 0.0
    %vm729 = vcmp.gt.f32.partialorder %v703, 0.0
    %vm730 = vcmp.gt.f32.partialorder %v708, 0.0
    %vm731 = vcmp.gt.f32.partialorder %v713, 0.0
    %vm732 = vcmp.gt.f32.partialorder %v718, 0.0
    %vm733 = vcmp.gt.f32.partialorder %v723, 0.0
    %v734 = vmul.f32 %v688, 0.01
    %v735 = vmul.f32 %v693, 0.01
    %v736 = vmul.f32 %v698, 0.01
    %v737 = vmul.f32 %v703, 0.01
    %v738 = vmul.f32 %v708, 0.01
    %v739 = vmul.f32 %v713, 0.01
    %v740 = vmul.f32 %v718, 0.01
    %v741 = vmul.f32 %v723, 0.01
    %v742 = vsel %vm726, %v688, %v734
    %v743 = vsel %vm727, %v693, %v735
    %v744 = vsel %vm728, %v698, %v736
    %v745 = vsel %vm729, %v703, %v737
    %v746 = vsel %vm730, %v708, %v738
    %v747 = vsel %vm731, %v713, %v739
    %v748 = vsel %vm732, %v718, %v740
    %v749 = vsel %vm733, %v723, %v741
    %s750 = scalar_lea.vmem [#allocation2], 512
    %v751 = vld [vmem:[%s750] sm:$0xff]
    %v752 = vld [vmem:[%s750 + $0x8] sm:$0xff]
    %v753 = vld [vmem:[%s750 + $0x10] sm:$0xff]
    %v754 = vld [vmem:[%s750 + $0x18] sm:$0xff]
    %v755 = vld [vmem:[%s750 + $0x20] sm:$0xff]
    %v756 = vld [vmem:[%s750 + $0x28] sm:$0xff]
    %v757 = vld [vmem:[%s750 + $0x30] sm:$0xff]
    %v758 = vld [vmem:[%s750 + $0x38] sm:$0xff]
    %v759 = vld [vmem:[%s750 + $0x40] sm:$0xff]
    %v760 = vld [vmem:[%s750 + $0x48] sm:$0xff]
    %v761 = vld [vmem:[%s750 + $0x50] sm:$0xff]
    %v762 = vld [vmem:[%s750 + $0x58] sm:$0xff]
    %v763 = vld [vmem:[%s750 + $0x60] sm:$0xff]
    %v764 = vld [vmem:[%s750 + $0x68] sm:$0xff]
    %v765 = vld [vmem:[%s750 + $0x70] sm:$0xff]
    %v766 = vld [vmem:[%s750 + $0x78] sm:$0xff]
    %v767 = vlaneseq
    %v768 = vshrl.u32 %v767, 7
    %v769 = vsub.s32 4, %v768
    %v770 = vrot.slane %v59, %v769
    %771 = vmatprep.subr.mxu0 0.0
    %772 = vmatpush1.msra.mxu0 %v751
    %773 = vmatprep.subr.mxu0 0.0
    %774 = vmatpush1.msra.mxu0 %v752
    %775 = vmatprep.subr.mxu0 0.0
    %776 = vmatpush1.msra.mxu0 %v753
    %777 = vmatprep.subr.mxu0 0.0
    %778 = vmatpush1.msra.mxu0 %v754
    %779 = vmatprep.subr.mxu0 0.0
    %780 = vmatpush1.msra.mxu0 %v755
    %781 = vmatprep.subr.mxu0 0.0
    %782 = vmatpush1.msra.mxu0 %v756
    %783 = vmatprep.subr.mxu0 0.0
    %784 = vmatpush1.msra.mxu0 %v757
    %785 = vmatprep.subr.mxu0 0.0
    %786 = vmatpush1.msra.mxu0 %v758
    %787 = vmatprep.subr.mxu0 0.0
    %788 = vmatpush1.msra.mxu0 %v759
    %789 = vmatprep.subr.mxu0 0.0
    %790 = vmatpush1.msra.mxu0 %v760
    %791 = vmatprep.subr.mxu0 0.0
    %792 = vmatpush1.msra.mxu0 %v761
    %793 = vmatprep.subr.mxu0 0.0
    %794 = vmatpush1.msra.mxu0 %v762
    %795 = vmatprep.subr.mxu0 0.0
    %796 = vmatpush1.msra.mxu0 %v763
    %797 = vmatprep.subr.mxu0 0.0
    %798 = vmatpush1.msra.mxu0 %v764
    %799 = vmatprep.subr.mxu0 0.0
    %800 = vmatpush1.msra.mxu0 %v765
    %801 = vmatprep.subr.mxu0 0.0
    %802 = vmatpush1.msra.mxu0 %v766
    %803 = vmatprep.subr.mxu0 0.0
    %804 = vmatpush1.msra.mxu0 0.0
    %805 = vmatprep.subr.mxu0 0.0
    %806 = vmatpush1.msra.mxu0 0.0
    %807 = vmatprep.subr.mxu0 0.0
    %808 = vmatpush1.msra.mxu0 0.0
    %809 = vmatprep.subr.mxu0 0.0
    %810 = vmatpush1.msra.mxu0 0.0
    %811 = vmatprep.subr.mxu0 0.0
    %812 = vmatpush1.msra.mxu0 0.0
    %813 = vmatprep.subr.mxu0 0.0
    %814 = vmatpush1.msra.mxu0 0.0
    %815 = vmatprep.subr.mxu0 0.0
    %816 = vmatpush1.msra.mxu0 0.0
    %817 = vmatprep.subr.mxu0 0.0
    %818 = vmatpush1.msra.mxu0 0.0
    %819 = vmatprep.subr.mxu0 0.0
    %820 = vmatpush1.msra.mxu0 0.0
    %821 = vmatprep.subr.mxu0 0.0
    %822 = vmatpush1.msra.mxu0 0.0
    %823 = vmatprep.subr.mxu0 0.0
    %824 = vmatpush1.msra.mxu0 0.0
    %825 = vmatprep.subr.mxu0 0.0
    %826 = vmatpush1.msra.mxu0 0.0
    %827 = vmatprep.subr.mxu0 0.0
    %828 = vmatpush1.msra.mxu0 0.0
    %829 = vmatprep.subr.mxu0 0.0
    %830 = vmatpush1.msra.mxu0 0.0
    %831 = vmatprep.subr.mxu0 0.0
    %832 = vmatpush1.msra.mxu0 0.0
    %833 = vmatprep.subr.mxu0 0.0
    %834 = vmatpush1.msra.mxu0 0.0
    %835 = vmatprep.mubr.f32.mxu0 0.0
    %836 = vmatmul.mubr.f32.gmra.mrb[0].mxu0 %v742
    %v837 = vpop.f32.mrb[0].mxu0
    %v838 = vadd.f32 %v770, %v837
    %v839 = vpop.f32.mrb[0].mxu0
    %840 = vmatprep.mubr.f32.mxu0 0.0
    %841 = vmatmul.mubr.f32.gmra.mrb[0].mxu0 %v743
    %v842 = vpop.f32.mrb[0].mxu0
    %v843 = vadd.f32 %v770, %v842
    %v844 = vpop.f32.mrb[0].mxu0
    %845 = vmatprep.mubr.f32.mxu0 0.0
    %846 = vmatmul.mubr.f32.gmra.mrb[0].mxu0 %v744
    %v847 = vpop.f32.mrb[0].mxu0
    %v848 = vadd.f32 %v770, %v847
    %v849 = vpop.f32.mrb[0].mxu0
    %850 = vmatprep.mubr.f32.mxu0 0.0
    %851 = vmatmul.mubr.f32.gmra.mrb[0].mxu0 %v745
    %v852 = vpop.f32.mrb[0].mxu0
    %v853 = vadd.f32 %v770, %v852
    %v854 = vpop.f32.mrb[0].mxu0
    %855 = vmatprep.mubr.f32.mxu0 0.0
    %856 = vmatmul.mubr.f32.gmra.mrb[0].mxu0 %v746
    %v857 = vpop.f32.mrb[0].mxu0
    %v858 = vadd.f32 %v770, %v857
    %v859 = vpop.f32.mrb[0].mxu0
    %860 = vmatprep.mubr.f32.mxu0 0.0
    %861 = vmatmul.mubr.f32.gmra.mrb[0].mxu0 %v747
    %v862 = vpop.f32.mrb[0].mxu0
    %v863 = vadd.f32 %v770, %v862
    %v864 = vpop.f32.mrb[0].mxu0
    %865 = vmatprep.mubr.f32.mxu0 0.0
    %866 = vmatmul.mubr.f32.gmra.mrb[0].mxu0 %v748
    %v867 = vpop.f32.mrb[0].mxu0
    %v868 = vadd.f32 %v770, %v867
    %v869 = vpop.f32.mrb[0].mxu0
    %870 = vmatprep.mubr.f32.mxu0 0.0
    %871 = vmatmul.mubr.f32.gmra.mrb[0].mxu0 %v749
    %v872 = vpop.f32.mrb[0].mxu0
    %v873 = vadd.f32 %v770, %v872
    %v874 = vpop.f32.mrb[0].mxu0
    %875 = vdwg.mxu0
    %s876 = scalar_lea.vmem [#allocation2], 640
    %v877 = vld [vmem:[%s876] sm:$0xff]
    %v878 = vld [vmem:[%s876 + $0x8] sm:$0xff]
    %v879 = vld [vmem:[%s876 + $0x10] sm:$0xff]
    %v880 = vld [vmem:[%s876 + $0x18] sm:$0xff]
    %v881 = vld [vmem:[%s876 + $0x20] sm:$0xff]
    %v882 = vld [vmem:[%s876 + $0x28] sm:$0xff]
    %v883 = vld [vmem:[%s876 + $0x30] sm:$0xff]
    %v884 = vld [vmem:[%s876 + $0x38] sm:$0xff]
    %v885 = vld [vmem:[%s876 + $0x40] sm:$0xff]
    %v886 = vld [vmem:[%s876 + $0x48] sm:$0xff]
    %v887 = vld [vmem:[%s876 + $0x50] sm:$0xff]
    %v888 = vld [vmem:[%s876 + $0x58] sm:$0xff]
    %v889 = vld [vmem:[%s876 + $0x60] sm:$0xff]
    %v890 = vld [vmem:[%s876 + $0x68] sm:$0xff]
    %v891 = vld [vmem:[%s876 + $0x70] sm:$0xff]
    %v892 = vld [vmem:[%s876 + $0x78] sm:$0xff]
    %v893 = vlaneseq
    %v894 = vshrl.u32 %v893, 7
    %v895 = vsub.s32 5, %v894
    %v896 = vrot.slane %v59, %v895
    %897 = vmatprep.subr.mxu0 0.0
    %898 = vmatpush1.msra.mxu0 %v877
    %899 = vmatprep.subr.mxu0 0.0
    %900 = vmatpush1.msra.mxu0 %v878
    %901 = vmatprep.subr.mxu0 0.0
    %902 = vmatpush1.msra.mxu0 %v879
    %903 = vmatprep.subr.mxu0 0.0
    %904 = vmatpush1.msra.mxu0 %v880
    %905 = vmatprep.subr.mxu0 0.0
    %906 = vmatpush1.msra.mxu0 %v881
    %907 = vmatprep.subr.mxu0 0.0
    %908 = vmatpush1.msra.mxu0 %v882
    %909 = vmatprep.subr.mxu0 0.0
    %910 = vmatpush1.msra.mxu0 %v883
    %911 = vmatprep.subr.mxu0 0.0
    %912 = vmatpush1.msra.mxu0 %v884
    %913 = vmatprep.subr.mxu0 0.0
    %914 = vmatpush1.msra.mxu0 %v885
    %915 = vmatprep.subr.mxu0 0.0
    %916 = vmatpush1.msra.mxu0 %v886
    %917 = vmatprep.subr.mxu0 0.0
    %918 = vmatpush1.msra.mxu0 %v887
    %919 = vmatprep.subr.mxu0 0.0
    %920 = vmatpush1.msra.mxu0 %v888
    %921 = vmatprep.subr.mxu0 0.0
    %922 = vmatpush1.msra.mxu0 %v889
    %923 = vmatprep.subr.mxu0 0.0
    %924 = vmatpush1.msra.mxu0 %v890
    %925 = vmatprep.subr.mxu0 0.0
    %926 = vmatpush1.msra.mxu0 %v891
    %927 = vmatprep.subr.mxu0 0.0
    %928 = vmatpush1.msra.mxu0 %v892
    %929 = vmatprep.subr.mxu0 0.0
    %930 = vmatpush1.msra.mxu0 0.0
    %931 = vmatprep.subr.mxu0 0.0
    %932 = vmatpush1.msra.mxu0 0.0
    %933 = vmatprep.subr.mxu0 0.0
    %934 = vmatpush1.msra.mxu0 0.0
    %935 = vmatprep.subr.mxu0 0.0
    %936 = vmatpush1.msra.mxu0 0.0
    %937 = vmatprep.subr.mxu0 0.0
    %938 = vmatpush1.msra.mxu0 0.0
    %939 = vmatprep.subr.mxu0 0.0
    %940 = vmatpush1.msra.mxu0 0.0
    %941 = vmatprep.subr.mxu0 0.0
    %942 = vmatpush1.msra.mxu0 0.0
    %943 = vmatprep.subr.mxu0 0.0
    %944 = vmatpush1.msra.mxu0 0.0
    %945 = vmatprep.subr.mxu0 0.0
    %946 = vmatpush1.msra.mxu0 0.0
    %947 = vmatprep.subr.mxu0 0.0
    %948 = vmatpush1.msra.mxu0 0.0
    %949 = vmatprep.subr.mxu0 0.0
    %950 = vmatpush1.msra.mxu0 0.0
    %951 = vmatprep.subr.mxu0 0.0
    %952 = vmatpush1.msra.mxu0 0.0
    %953 = vmatprep.subr.mxu0 0.0
    %954 = vmatpush1.msra.mxu0 0.0
    %955 = vmatprep.subr.mxu0 0.0
    %956 = vmatpush1.msra.mxu0 0.0
    %957 = vmatprep.subr.mxu0 0.0
    %958 = vmatpush1.msra.mxu0 0.0
    %959 = vmatprep.subr.mxu0 0.0
    %960 = vmatpush1.msra.mxu0 0.0
    %961 = vmatprep.mubr.f32.mxu0 0.0
    %962 = vmatmul.mubr.f32.gmra.mrb[0].mxu0 %v263
    %v963 = vpop.f32.mrb[0].mxu0
    %v964 = vadd.f32 %v896, %v963
    %v965 = vpop.f32.mrb[0].mxu0
    %966 = vdwg.mxu0
    %v967 = vpack.c.bf16 %v964, %v964
    %v976 = vunpack.c.l.b16 %v61
    %v977 = vunpack.c.l.b16 %v62
    %v978 = vunpack.c.l.b16 %v63
    %v979 = vunpack.c.l.b16 %v64
    %v980 = vunpack.c.l.b16 %v65
    %v981 = vunpack.c.l.b16 %v66
    %v982 = vunpack.c.l.b16 %v67
    %v983 = vunpack.c.l.b16 %v68
    %v984 = vpack.c.b16 %v977, %v976
    %v985 = vpack.c.b16 %v979, %v978
    %v986 = vpack.c.b16 %v981, %v980
    %v987 = vpack.c.b16 %v983, %v982
    %v989 = vsel %vm396, %v984, 0
    %v992 = vsel %vm396, %v985, 0
    %v995 = vsel %vm396, %v986, 0
    %v998 = vsel %vm396, %v987, 0
    %v1001 = vsel %vm409, %v967, 0
    %1003 = vmatprep.subr.bf16.mxu0 0
    %1004 = vmatpush1.bf16.msra.mxu0 %v1001
    %1005 = vmatprep.subr.bf16.mxu0 0
    %1006 = vmatpush1.bf16.msra.mxu0 0
    %1007 = vmatprep.subr.bf16.mxu0 0
    %1008 = vmatpush1.bf16.msra.mxu0 0
    %1009 = vmatprep.subr.bf16.mxu0 0
    %1010 = vmatpush1.bf16.msra.mxu0 0
    %1011 = vmatprep.subr.bf16.mxu0 0
    %1012 = vmatpush1.bf16.msra.mxu0 0
    %1013 = vmatprep.subr.bf16.mxu0 0
    %1014 = vmatpush1.bf16.msra.mxu0 0
    %1015 = vmatprep.subr.bf16.mxu0 0
    %1016 = vmatpush1.bf16.msra.mxu0 0
    %1017 = vmatprep.subr.bf16.mxu0 0
    %1018 = vmatpush1.bf16.msra.mxu0 0
    %1019 = vmatprep.subr.bf16.mxu0 0
    %1020 = vmatpush1.bf16.msra.mxu0 0
    %1021 = vmatprep.subr.bf16.mxu0 0
    %1022 = vmatpush1.bf16.msra.mxu0 0
    %1023 = vmatprep.subr.bf16.mxu0 0
    %1024 = vmatpush1.bf16.msra.mxu0 0
    %1025 = vmatprep.subr.bf16.mxu0 0
    %1026 = vmatpush1.bf16.msra.mxu0 0
    %1027 = vmatprep.subr.bf16.mxu0 0
    %1028 = vmatpush1.bf16.msra.mxu0 0
    %1029 = vmatprep.subr.bf16.mxu0 0
    %1030 = vmatpush1.bf16.msra.mxu0 0
    %1031 = vmatprep.subr.bf16.mxu0 0
    %1032 = vmatpush1.bf16.msra.mxu0 0
    %1033 = vmatprep.subr.bf16.mxu0 0
    %1034 = vmatpush1.bf16.msra.mxu0 0
    %1035 = vmatprep.mubr.bf16.mxu0 0
    %1036 = vmatmul.mubr.bf16.gmra.mrb[0].mxu0 %v989
    %v1037 = vpop.f32.mrb[0].mxu0
    %v1038 = vadd.f32 0.0, %v1037
    %v1039 = vpop.f32.mrb[0].mxu0
    %v1040 = vpop.f32.mrb[0].mxu0
    %v1041 = vadd.f32 0.0, %v1040
    %v1042 = vpop.f32.mrb[0].mxu0
    %1043 = vmatprep.mubr.bf16.mxu0 0
    %1044 = vmatmul.mubr.bf16.gmra.mrb[0].mxu0 %v992
    %v1045 = vpop.f32.mrb[0].mxu0
    %v1046 = vadd.f32 0.0, %v1045
    %v1047 = vpop.f32.mrb[0].mxu0
    %v1048 = vpop.f32.mrb[0].mxu0
    %v1049 = vadd.f32 0.0, %v1048
    %v1050 = vpop.f32.mrb[0].mxu0
    %1051 = vmatprep.mubr.bf16.mxu0 0
    %1052 = vmatmul.mubr.bf16.gmra.mrb[0].mxu0 %v995
    %v1053 = vpop.f32.mrb[0].mxu0
    %v1054 = vadd.f32 0.0, %v1053
    %v1055 = vpop.f32.mrb[0].mxu0
    %v1056 = vpop.f32.mrb[0].mxu0
    %v1057 = vadd.f32 0.0, %v1056
    %v1058 = vpop.f32.mrb[0].mxu0
    %1059 = vmatprep.mubr.bf16.mxu0 0
    %1060 = vmatmul.mubr.bf16.gmra.mrb[0].mxu0 %v998
    %v1061 = vpop.f32.mrb[0].mxu0
    %v1062 = vadd.f32 0.0, %v1061
    %v1063 = vpop.f32.mrb[0].mxu0
    %v1064 = vpop.f32.mrb[0].mxu0
    %v1065 = vadd.f32 0.0, %v1064
    %v1066 = vpop.f32.mrb[0].mxu0
    %1067 = vdwg.mxu0
    %v1068 = vadd.f32 %v838, %v1038
    %v1069 = vadd.f32 %v843, %v1041
    %v1070 = vadd.f32 %v848, %v1046
    %v1071 = vadd.f32 %v853, %v1049
    %v1072 = vadd.f32 %v858, %v1054
    %v1073 = vadd.f32 %v863, %v1057
    %v1074 = vadd.f32 %v868, %v1062
    %v1075 = vadd.f32 %v873, %v1065
    %vm1076 = vcmp.gt.f32.partialorder %v1068, 0.0
    %vm1077 = vcmp.gt.f32.partialorder %v1069, 0.0
    %vm1078 = vcmp.gt.f32.partialorder %v1070, 0.0
    %vm1079 = vcmp.gt.f32.partialorder %v1071, 0.0
    %vm1080 = vcmp.gt.f32.partialorder %v1072, 0.0
    %vm1081 = vcmp.gt.f32.partialorder %v1073, 0.0
    %vm1082 = vcmp.gt.f32.partialorder %v1074, 0.0
    %vm1083 = vcmp.gt.f32.partialorder %v1075, 0.0
    %v1084 = vmul.f32 %v1068, 0.01
    %v1085 = vmul.f32 %v1069, 0.01
    %v1086 = vmul.f32 %v1070, 0.01
    %v1087 = vmul.f32 %v1071, 0.01
    %v1088 = vmul.f32 %v1072, 0.01
    %v1089 = vmul.f32 %v1073, 0.01
    %v1090 = vmul.f32 %v1074, 0.01
    %v1091 = vmul.f32 %v1075, 0.01
    %v1092 = vsel %vm1076, %v1068, %v1084
    %v1093 = vsel %vm1077, %v1069, %v1085
    %v1094 = vsel %vm1078, %v1070, %v1086
    %v1095 = vsel %vm1079, %v1071, %v1087
    %v1096 = vsel %vm1080, %v1072, %v1088
    %v1097 = vsel %vm1081, %v1073, %v1089
    %v1098 = vsel %vm1082, %v1074, %v1090
    %v1099 = vsel %vm1083, %v1075, %v1091
    %s1100 = scalar_lea.vmem [#allocation2], 768
    %v1101 = vld [vmem:[%s1100] sm:$0xff]
    %v1102 = vld [vmem:[%s1100 + $0x8] sm:$0xff]
    %v1103 = vld [vmem:[%s1100 + $0x10] sm:$0xff]
    %v1104 = vld [vmem:[%s1100 + $0x18] sm:$0xff]
    %v1105 = vld [vmem:[%s1100 + $0x20] sm:$0xff]
    %v1106 = vld [vmem:[%s1100 + $0x28] sm:$0xff]
    %v1107 = vld [vmem:[%s1100 + $0x30] sm:$0xff]
    %v1108 = vld [vmem:[%s1100 + $0x38] sm:$0xff]
    %v1109 = vld [vmem:[%s1100 + $0x40] sm:$0xff]
    %v1110 = vld [vmem:[%s1100 + $0x48] sm:$0xff]
    %v1111 = vld [vmem:[%s1100 + $0x50] sm:$0xff]
    %v1112 = vld [vmem:[%s1100 + $0x58] sm:$0xff]
    %v1113 = vld [vmem:[%s1100 + $0x60] sm:$0xff]
    %v1114 = vld [vmem:[%s1100 + $0x68] sm:$0xff]
    %v1115 = vld [vmem:[%s1100 + $0x70] sm:$0xff]
    %v1116 = vld [vmem:[%s1100 + $0x78] sm:$0xff]
    %v1117 = vlaneseq
    %v1118 = vshrl.u32 %v1117, 7
    %v1119 = vsub.s32 6, %v1118
    %v1120 = vrot.slane %v59, %v1119
    %1121 = vmatprep.subr.mxu0 0.0
    %1122 = vmatpush1.msra.mxu0 %v1101
    %1123 = vmatprep.subr.mxu0 0.0
    %1124 = vmatpush1.msra.mxu0 %v1102
    %1125 = vmatprep.subr.mxu0 0.0
    %1126 = vmatpush1.msra.mxu0 %v1103
    %1127 = vmatprep.subr.mxu0 0.0
    %1128 = vmatpush1.msra.mxu0 %v1104
    %1129 = vmatprep.subr.mxu0 0.0
    %1130 = vmatpush1.msra.mxu0 %v1105
    %1131 = vmatprep.subr.mxu0 0.0
    %1132 = vmatpush1.msra.mxu0 %v1106
    %1133 = vmatprep.subr.mxu0 0.0
    %1134 = vmatpush1.msra.mxu0 %v1107
    %1135 = vmatprep.subr.mxu0 0.0
    %1136 = vmatpush1.msra.mxu0 %v1108
    %1137 = vmatprep.subr.mxu0 0.0
    %1138 = vmatpush1.msra.mxu0 %v1109
    %1139 = vmatprep.subr.mxu0 0.0
    %1140 = vmatpush1.msra.mxu0 %v1110
    %1141 = vmatprep.subr.mxu0 0.0
    %1142 = vmatpush1.msra.mxu0 %v1111
    %1143 = vmatprep.subr.mxu0 0.0
    %1144 = vmatpush1.msra.mxu0 %v1112
    %1145 = vmatprep.subr.mxu0 0.0
    %1146 = vmatpush1.msra.mxu0 %v1113
    %1147 = vmatprep.subr.mxu0 0.0
    %1148 = vmatpush1.msra.mxu0 %v1114
    %1149 = vmatprep.subr.mxu0 0.0
    %1150 = vmatpush1.msra.mxu0 %v1115
    %1151 = vmatprep.subr.mxu0 0.0
    %1152 = vmatpush1.msra.mxu0 %v1116
    %1153 = vmatprep.subr.mxu0 0.0
    %1154 = vmatpush1.msra.mxu0 0.0
    %1155 = vmatprep.subr.mxu0 0.0
    %1156 = vmatpush1.msra.mxu0 0.0
    %1157 = vmatprep.subr.mxu0 0.0
    %1158 = vmatpush1.msra.mxu0 0.0
    %1159 = vmatprep.subr.mxu0 0.0
    %1160 = vmatpush1.msra.mxu0 0.0
    %1161 = vmatprep.subr.mxu0 0.0
    %1162 = vmatpush1.msra.mxu0 0.0
    %1163 = vmatprep.subr.mxu0 0.0
    %1164 = vmatpush1.msra.mxu0 0.0
    %1165 = vmatprep.subr.mxu0 0.0
    %1166 = vmatpush1.msra.mxu0 0.0
    %1167 = vmatprep.subr.mxu0 0.0
    %1168 = vmatpush1.msra.mxu0 0.0
    %1169 = vmatprep.subr.mxu0 0.0
    %1170 = vmatpush1.msra.mxu0 0.0
    %1171 = vmatprep.subr.mxu0 0.0
    %1172 = vmatpush1.msra.mxu0 0.0
    %1173 = vmatprep.subr.mxu0 0.0
    %1174 = vmatpush1.msra.mxu0 0.0
    %1175 = vmatprep.subr.mxu0 0.0
    %1176 = vmatpush1.msra.mxu0 0.0
    %1177 = vmatprep.subr.mxu0 0.0
    %1178 = vmatpush1.msra.mxu0 0.0
    %1179 = vmatprep.subr.mxu0 0.0
    %1180 = vmatpush1.msra.mxu0 0.0
    %1181 = vmatprep.subr.mxu0 0.0
    %1182 = vmatpush1.msra.mxu0 0.0
    %1183 = vmatprep.subr.mxu0 0.0
    %1184 = vmatpush1.msra.mxu0 0.0
    %1185 = vmatprep.mubr.f32.mxu0 0.0
    %1186 = vmatmul.mubr.f32.gmra.mrb[0].mxu0 %v1092
    %v1187 = vpop.f32.mrb[0].mxu0
    %v1188 = vadd.f32 %v1120, %v1187
    %v1189 = vpop.f32.mrb[0].mxu0
    %1190 = vmatprep.mubr.f32.mxu0 0.0
    %1191 = vmatmul.mubr.f32.gmra.mrb[0].mxu0 %v1093
    %v1192 = vpop.f32.mrb[0].mxu0
    %v1193 = vadd.f32 %v1120, %v1192
    %v1194 = vpop.f32.mrb[0].mxu0
    %1195 = vmatprep.mubr.f32.mxu0 0.0
    %1196 = vmatmul.mubr.f32.gmra.mrb[0].mxu0 %v1094
    %v1197 = vpop.f32.mrb[0].mxu0
    %v1198 = vadd.f32 %v1120, %v1197
    %v1199 = vpop.f32.mrb[0].mxu0
    %1200 = vmatprep.mubr.f32.mxu0 0.0
    %1201 = vmatmul.mubr.f32.gmra.mrb[0].mxu0 %v1095
    %v1202 = vpop.f32.mrb[0].mxu0
    %v1203 = vadd.f32 %v1120, %v1202
    %v1204 = vpop.f32.mrb[0].mxu0
    %1205 = vmatprep.mubr.f32.mxu0 0.0
    %1206 = vmatmul.mubr.f32.gmra.mrb[0].mxu0 %v1096
    %v1207 = vpop.f32.mrb[0].mxu0
    %v1208 = vadd.f32 %v1120, %v1207
    %v1209 = vpop.f32.mrb[0].mxu0
    %1210 = vmatprep.mubr.f32.mxu0 0.0
    %1211 = vmatmul.mubr.f32.gmra.mrb[0].mxu0 %v1097
    %v1212 = vpop.f32.mrb[0].mxu0
    %v1213 = vadd.f32 %v1120, %v1212
    %v1214 = vpop.f32.mrb[0].mxu0
    %1215 = vmatprep.mubr.f32.mxu0 0.0
    %1216 = vmatmul.mubr.f32.gmra.mrb[0].mxu0 %v1098
    %v1217 = vpop.f32.mrb[0].mxu0
    %v1218 = vadd.f32 %v1120, %v1217
    %v1219 = vpop.f32.mrb[0].mxu0
    %1220 = vmatprep.mubr.f32.mxu0 0.0
    %1221 = vmatmul.mubr.f32.gmra.mrb[0].mxu0 %v1099
    %v1222 = vpop.f32.mrb[0].mxu0
    %v1223 = vadd.f32 %v1120, %v1222
    %v1224 = vpop.f32.mrb[0].mxu0
    %1225 = vdwg.mxu0
    %vm1226 = vcmp.gt.f32.partialorder %v1188, 0.0
    %vm1227 = vcmp.gt.f32.partialorder %v1193, 0.0
    %vm1228 = vcmp.gt.f32.partialorder %v1198, 0.0
    %vm1229 = vcmp.gt.f32.partialorder %v1203, 0.0
    %vm1230 = vcmp.gt.f32.partialorder %v1208, 0.0
    %vm1231 = vcmp.gt.f32.partialorder %v1213, 0.0
    %vm1232 = vcmp.gt.f32.partialorder %v1218, 0.0
    %vm1233 = vcmp.gt.f32.partialorder %v1223, 0.0
    %v1234 = vmul.f32 %v1188, 0.01
    %v1235 = vmul.f32 %v1193, 0.01
    %v1236 = vmul.f32 %v1198, 0.01
    %v1237 = vmul.f32 %v1203, 0.01
    %v1238 = vmul.f32 %v1208, 0.01
    %v1239 = vmul.f32 %v1213, 0.01
    %v1240 = vmul.f32 %v1218, 0.01
    %v1241 = vmul.f32 %v1223, 0.01
    %v1242 = vsel %vm1226, %v1188, %v1234
    %v1243 = vsel %vm1227, %v1193, %v1235
    %v1244 = vsel %vm1228, %v1198, %v1236
    %v1245 = vsel %vm1229, %v1203, %v1237
    %v1246 = vsel %vm1230, %v1208, %v1238
    %v1247 = vsel %vm1231, %v1213, %v1239
    %v1248 = vsel %vm1232, %v1218, %v1240
    %v1249 = vsel %vm1233, %v1223, %v1241
    %v1250 = vlaneseq
    %v1251 = vshrl.u32 %v1250, 7
    %v1252 = vsub.s32 0, %v1251
    %v1253 = vrot.slane %v60, %v1252
    %v1254 = vmul.f32 %v1242, %v1253
    %v1255 = vmul.f32 %v1243, %v1253
    %v1256 = vmul.f32 %v1244, %v1253
    %v1257 = vmul.f32 %v1245, %v1253
    %v1258 = vmul.f32 %v1246, %v1253
    %v1259 = vmul.f32 %v1247, %v1253
    %v1260 = vmul.f32 %v1248, %v1253
    %v1261 = vmul.f32 %v1249, %v1253
    %1262 = vadd.xlane.f32.xlu0 %v1254
    %v1263 = vpop.xlane.xlu0 %1262
    %1264 = vadd.xlane.f32.xlu0 %v1255
    %v1265 = vpop.xlane.xlu0 %1264
    %1266 = vadd.xlane.f32.xlu0 %v1256
    %v1267 = vpop.xlane.xlu0 %1266
    %1268 = vadd.xlane.f32.xlu0 %v1257
    %v1269 = vpop.xlane.xlu0 %1268
    %1270 = vadd.xlane.f32.xlu0 %v1258
    %v1271 = vpop.xlane.xlu0 %1270
    %1272 = vadd.xlane.f32.xlu0 %v1259
    %v1273 = vpop.xlane.xlu0 %1272
    %1274 = vadd.xlane.f32.xlu0 %v1260
    %v1275 = vpop.xlane.xlu0 %1274
    %1276 = vadd.xlane.f32.xlu0 %v1261
    %v1277 = vpop.xlane.xlu0 %1276
    %vm1278 = vcmp.gt.f32.partialorder %v69, 0.0
    %vm1279 = vcmp.gt.f32.partialorder %v70, 0.0
    %vm1280 = vcmp.gt.f32.partialorder %v71, 0.0
    %vm1281 = vcmp.gt.f32.partialorder %v72, 0.0
    %vm1282 = vcmp.gt.f32.partialorder %v73, 0.0
    %vm1283 = vcmp.gt.f32.partialorder %v74, 0.0
    %vm1284 = vcmp.gt.f32.partialorder %v75, 0.0
    %vm1285 = vcmp.gt.f32.partialorder %v76, 0.0
    %v1286 = vsel %vm1278, %v1263, -1e+30
    %v1287 = vsel %vm1279, %v1265, -1e+30
    %v1288 = vsel %vm1280, %v1267, -1e+30
    %v1289 = vsel %vm1281, %v1269, -1e+30
    %v1290 = vsel %vm1282, %v1271, -1e+30
    %v1291 = vsel %vm1283, %v1273, -1e+30
    %v1292 = vsel %vm1284, %v1275, -1e+30
    %v1293 = vsel %vm1285, %v1277, -1e+30
    %v1294 = vsel %vm396, %v1286, -inf
    %v1295 = vsel %vm396, %v1287, -inf
    %v1296 = vsel %vm396, %v1288, -inf
    %v1297 = vsel %vm396, %v1289, -inf
    %v1298 = vsel %vm396, %v1290, -inf
    %v1299 = vmax.f32 %v1294, %v1298
    %v1300 = vsel %vm396, %v1291, -inf
    %v1301 = vmax.f32 %v1295, %v1300
    %v1302 = vsel %vm396, %v1292, -inf
    %v1303 = vmax.f32 %v1296, %v1302
    %v1304 = vsel %vm396, %v1293, -inf
    %v1305 = vmax.f32 %v1297, %v1304
    %v1306 = vmax.f32 %v1299, %v1301
    %v1307 = vmax.f32 %v1303, %v1305
    %v1308 = vmax.f32 %v1306, %v1307
    %v1309 = vrot.slane %v1308, 4
    %v1310 = vmax.f32 %v1308, %v1309
    %v1311 = vrot.slane %v1310, 2
    %v1312 = vmax.f32 %v1310, %v1311
    %v1313 = vrot.slane %v1312, 1
    %v1314 = vmax.f32 %v1312, %v1313
    %v1315 = vmul.f32 %v69, %v1314
    %v1316 = vmul.f32 %v70, %v1314
    %v1317 = vmul.f32 %v71, %v1314
    %v1318 = vmul.f32 %v72, %v1314
    %v1319 = vmul.f32 %v73, %v1314
    %v1320 = vmul.f32 %v74, %v1314
    %v1321 = vmul.f32 %v75, %v1314
    %v1322 = vmul.f32 %v76, %v1314
    %v1323 = vsel %vm396, %v1315, 0.0
    %1324 = vadd.xlane.f32.xlu0 %v1323
    %v1325 = vpop.xlane.xlu0 %1324
    %v1326 = vsel %vm396, %v1316, 0.0
    %1327 = vadd.xlane.f32.xlu0 %v1326
    %v1328 = vpop.xlane.xlu0 %1327
    %v1329 = vsel %vm396, %v1317, 0.0
    %1330 = vadd.xlane.f32.xlu0 %v1329
    %v1331 = vpop.xlane.xlu0 %1330
    %v1332 = vsel %vm396, %v1318, 0.0
    %1333 = vadd.xlane.f32.xlu0 %v1332
    %v1334 = vpop.xlane.xlu0 %1333
    %v1335 = vsel %vm396, %v1319, 0.0
    %1336 = vadd.xlane.f32.xlu0 %v1335
    %v1337 = vpop.xlane.xlu0 %1336
    %v1338 = vsel %vm396, %v1320, 0.0
    %1339 = vadd.xlane.f32.xlu0 %v1338
    %v1340 = vpop.xlane.xlu0 %1339
    %v1341 = vsel %vm396, %v1321, 0.0
    %1342 = vadd.xlane.f32.xlu0 %v1341
    %v1343 = vpop.xlane.xlu0 %1342
    %v1344 = vsel %vm396, %v1322, 0.0
    %1345 = vadd.xlane.f32.xlu0 %v1344
    %v1346 = vpop.xlane.xlu0 %1345
    %v1347 = vsub.f32 %v1263, %v1325
    %v1348 = vsub.f32 %v1265, %v1328
    %v1349 = vsub.f32 %v1267, %v1331
    %v1350 = vsub.f32 %v1269, %v1334
    %v1351 = vsub.f32 %v1271, %v1337
    %v1352 = vsub.f32 %v1273, %v1340
    %v1353 = vsub.f32 %v1275, %v1343
    %v1354 = vsub.f32 %v1277, %v1346
    %v1355 = vmul.f32 %v1347, 1.442695
    %v1356 = vpow.pop %v1355
    %v1357 = vmul.f32 %v1348, 1.442695
    %v1358 = vpow.pop %v1357
    %v1359 = vmul.f32 %v1349, 1.442695
    %v1360 = vpow.pop %v1359
    %v1361 = vmul.f32 %v1350, 1.442695
    %v1362 = vpow.pop %v1361
    %v1363 = vmul.f32 %v1351, 1.442695
    %v1364 = vpow.pop %v1363
    %v1365 = vmul.f32 %v1352, 1.442695
    %v1366 = vpow.pop %v1365
    %v1367 = vmul.f32 %v1353, 1.442695
    %v1368 = vpow.pop %v1367
    %v1369 = vmul.f32 %v1354, 1.442695
    %v1370 = vpow.pop %v1369
    %v1371 = vlaneseq
    %v1372 = vand.u32 %v1371, 127
    %vm1373 = vcmp.eq.s32.totalorder %v1372, 32
    %v1374 = vsel %vm1373, 1, 0
    %v1375 = vcvt.s32.f32 %v1374
    %v1376 = vadd.f32 %v742, %v1375
    %v1377 = vadd.f32 %v743, %v1375
    %v1378 = vadd.f32 %v744, %v1375
    %v1379 = vadd.f32 %v745, %v1375
    %v1380 = vadd.f32 %v746, %v1375
    %v1381 = vadd.f32 %v747, %v1375
    %v1382 = vadd.f32 %v748, %v1375
    %v1383 = vadd.f32 %v749, %v1375
    %v1384 = vmul.f32 %v1356, %v1376
    %v1385 = vmul.f32 %v1358, %v1377
    %v1386 = vmul.f32 %v1360, %v1378
    %v1387 = vmul.f32 %v1362, %v1379
    %v1388 = vmul.f32 %v1364, %v1380
    %v1389 = vmul.f32 %v1366, %v1381
    %v1390 = vmul.f32 %v1368, %v1382
    %v1391 = vmul.f32 %v1370, %v1383
    %v1392 = vpack.c.bf16 %v1385, %v1384
    %v1393 = vpack.c.bf16 %v1387, %v1386
    %v1394 = vpack.c.bf16 %v1389, %v1388
    %v1395 = vpack.c.bf16 %v1391, %v1390
    %1400 = vxpose.xlu0.c.b16.start [1/8] %v984, 128
    %1401 = vxpose.xlu0.c.b16.cont [2/8] %v985, 128
    %1402 = vxpose.xlu0.c.b16.cont [3/8] %v986, 128
    %1403 = vxpose.xlu0.c.b16.cont [4/8] %v987, 128
    %1404 = vxpose.xlu0.c.b16.cont [5/8] 0, 128
    %1405 = vxpose.xlu0.c.b16.cont [6/8] 0, 128
    %1406 = vxpose.xlu0.c.b16.cont [7/8] 0, 128
    %1407 = vxpose.xlu0.c.b16.end [8/8] 0, 128
    %v1408 = vpop.trf.xlu0
    %v1409 = vpop.trf.xlu0
    %v1410 = vpop.trf.xlu0
    %v1411 = vpop.trf.xlu0
    %v1412 = vpop.trf.xlu0
    %v1413 = vpop.trf.xlu0
    %v1414 = vpop.trf.xlu0
    %v1415 = vpop.trf.xlu0
    %vm1416 = vcmask 523264
    %v1418 = vsel %vm1416, %v1408, 0
    %1420 = vmatprep.subr.bf16.mxu0 0
    %1421 = vmatpush1.bf16.msra.mxu0 %v1392
    %1422 = vmatprep.subr.bf16.mxu0 0
    %1423 = vmatpush1.bf16.msra.mxu0 %v1393
    %1424 = vmatprep.subr.bf16.mxu0 0
    %1425 = vmatpush1.bf16.msra.mxu0 %v1394
    %1426 = vmatprep.subr.bf16.mxu0 0
    %1427 = vmatpush1.bf16.msra.mxu0 %v1395
    %1428 = vmatprep.subr.bf16.mxu0 0
    %1429 = vmatpush1.bf16.msra.mxu0 0
    %1430 = vmatprep.subr.bf16.mxu0 0
    %1431 = vmatpush1.bf16.msra.mxu0 0
    %1432 = vmatprep.subr.bf16.mxu0 0
    %1433 = vmatpush1.bf16.msra.mxu0 0
    %1434 = vmatprep.subr.bf16.mxu0 0
    %1435 = vmatpush1.bf16.msra.mxu0 0
    %1436 = vmatprep.subr.bf16.mxu0 0
    %1437 = vmatpush1.bf16.msra.mxu0 0
    %1438 = vmatprep.subr.bf16.mxu0 0
    %1439 = vmatpush1.bf16.msra.mxu0 0
    %1440 = vmatprep.subr.bf16.mxu0 0
    %1441 = vmatpush1.bf16.msra.mxu0 0
    %1442 = vmatprep.subr.bf16.mxu0 0
    %1443 = vmatpush1.bf16.msra.mxu0 0
    %1444 = vmatprep.subr.bf16.mxu0 0
    %1445 = vmatpush1.bf16.msra.mxu0 0
    %1446 = vmatprep.subr.bf16.mxu0 0
    %1447 = vmatpush1.bf16.msra.mxu0 0
    %1448 = vmatprep.subr.bf16.mxu0 0
    %1449 = vmatpush1.bf16.msra.mxu0 0
    %1450 = vmatprep.subr.bf16.mxu0 0
    %1451 = vmatpush1.bf16.msra.mxu0 0
    %1452 = vmatprep.mubr.bf16.mxu0 0
    %1453 = vmatmul.mubr.bf16.gmra.mrb[0].mxu0 %v1418
    %v1454 = vpop.f32.mrb[0].mxu0
    %v1455 = vadd.f32 0.0, %v1454
    %v1456 = vpop.f32.mrb[0].mxu0
    %v1457 = vpop.f32.mrb[0].mxu0
    %v1458 = vpop.f32.mrb[0].mxu0
    %1459 = vdwg.mxu0
    %v1460 = vmul.f32 %v1455, %v1375
    %1461 = vadd.xlane.f32.xlu0 %v1460
    %v1462 = vpop.xlane.xlu0 %1461
    %v1463 = vmax.f32 %v1462, 1e-20
    %v1464 = vrcp.pop %v1463
    %v1465 = vmul.f32 %v1455, %v1464
    %s1466 = scalar_lea.vmem [#allocation2], 896
    %v1467 = vld [vmem:[%s1466] sm:$0xff]
    %v1468 = vld [vmem:[%s1466 + $0x8] sm:$0xff]
    %v1469 = vld [vmem:[%s1466 + $0x10] sm:$0xff]
    %v1470 = vld [vmem:[%s1466 + $0x18] sm:$0xff]
    %v1471 = vld [vmem:[%s1466 + $0x20] sm:$0xff]
    %v1472 = vld [vmem:[%s1466 + $0x28] sm:$0xff]
    %v1473 = vld [vmem:[%s1466 + $0x30] sm:$0xff]
    %v1474 = vld [vmem:[%s1466 + $0x38] sm:$0xff]
    %v1475 = vld [vmem:[%s1466 + $0x40] sm:$0xff]
    %v1476 = vld [vmem:[%s1466 + $0x48] sm:$0xff]
    %v1477 = vld [vmem:[%s1466 + $0x50] sm:$0xff]
    %v1478 = vld [vmem:[%s1466 + $0x58] sm:$0xff]
    %v1479 = vld [vmem:[%s1466 + $0x60] sm:$0xff]
    %v1480 = vld [vmem:[%s1466 + $0x68] sm:$0xff]
    %v1481 = vld [vmem:[%s1466 + $0x70] sm:$0xff]
    %v1482 = vld [vmem:[%s1466 + $0x78] sm:$0xff]
    %v1483 = vlaneseq
    %v1484 = vshrl.u32 %v1483, 7
    %v1485 = vsub.s32 7, %v1484
    %v1486 = vrot.slane %v59, %v1485
    %1487 = vmatprep.subr.mxu0 0.0
    %1488 = vmatpush1.msra.mxu0 %v1467
    %1489 = vmatprep.subr.mxu0 0.0
    %1490 = vmatpush1.msra.mxu0 %v1468
    %1491 = vmatprep.subr.mxu0 0.0
    %1492 = vmatpush1.msra.mxu0 %v1469
    %1493 = vmatprep.subr.mxu0 0.0
    %1494 = vmatpush1.msra.mxu0 %v1470
    %1495 = vmatprep.subr.mxu0 0.0
    %1496 = vmatpush1.msra.mxu0 %v1471
    %1497 = vmatprep.subr.mxu0 0.0
    %1498 = vmatpush1.msra.mxu0 %v1472
    %1499 = vmatprep.subr.mxu0 0.0
    %1500 = vmatpush1.msra.mxu0 %v1473
    %1501 = vmatprep.subr.mxu0 0.0
    %1502 = vmatpush1.msra.mxu0 %v1474
    %1503 = vmatprep.subr.mxu0 0.0
    %1504 = vmatpush1.msra.mxu0 %v1475
    %1505 = vmatprep.subr.mxu0 0.0
    %1506 = vmatpush1.msra.mxu0 %v1476
    %1507 = vmatprep.subr.mxu0 0.0
    %1508 = vmatpush1.msra.mxu0 %v1477
    %1509 = vmatprep.subr.mxu0 0.0
    %1510 = vmatpush1.msra.mxu0 %v1478
    %1511 = vmatprep.subr.mxu0 0.0
    %1512 = vmatpush1.msra.mxu0 %v1479
    %1513 = vmatprep.subr.mxu0 0.0
    %1514 = vmatpush1.msra.mxu0 %v1480
    %1515 = vmatprep.subr.mxu0 0.0
    %1516 = vmatpush1.msra.mxu0 %v1481
    %1517 = vmatprep.subr.mxu0 0.0
    %1518 = vmatpush1.msra.mxu0 %v1482
    %1519 = vmatprep.subr.mxu0 0.0
    %1520 = vmatpush1.msra.mxu0 0.0
    %1521 = vmatprep.subr.mxu0 0.0
    %1522 = vmatpush1.msra.mxu0 0.0
    %1523 = vmatprep.subr.mxu0 0.0
    %1524 = vmatpush1.msra.mxu0 0.0
    %1525 = vmatprep.subr.mxu0 0.0
    %1526 = vmatpush1.msra.mxu0 0.0
    %1527 = vmatprep.subr.mxu0 0.0
    %1528 = vmatpush1.msra.mxu0 0.0
    %1529 = vmatprep.subr.mxu0 0.0
    %1530 = vmatpush1.msra.mxu0 0.0
    %1531 = vmatprep.subr.mxu0 0.0
    %1532 = vmatpush1.msra.mxu0 0.0
    %1533 = vmatprep.subr.mxu0 0.0
    %1534 = vmatpush1.msra.mxu0 0.0
    %1535 = vmatprep.subr.mxu0 0.0
    %1536 = vmatpush1.msra.mxu0 0.0
    %1537 = vmatprep.subr.mxu0 0.0
    %1538 = vmatpush1.msra.mxu0 0.0
    %1539 = vmatprep.subr.mxu0 0.0
    %1540 = vmatpush1.msra.mxu0 0.0
    %1541 = vmatprep.subr.mxu0 0.0
    %1542 = vmatpush1.msra.mxu0 0.0
    %1543 = vmatprep.subr.mxu0 0.0
    %1544 = vmatpush1.msra.mxu0 0.0
    %1545 = vmatprep.subr.mxu0 0.0
    %1546 = vmatpush1.msra.mxu0 0.0
    %1547 = vmatprep.subr.mxu0 0.0
    %1548 = vmatpush1.msra.mxu0 0.0
    %1549 = vmatprep.subr.mxu0 0.0
    %1550 = vmatpush1.msra.mxu0 0.0
    %1551 = vmatprep.mubr.f32.mxu0 0.0
    %1552 = vmatmul.mubr.f32.gmra.mrb[0].mxu0 %v1465
    %v1553 = vpop.f32.mrb[0].mxu0
    %v1554 = vadd.f32 %v1486, %v1553
    %v1555 = vpop.f32.mrb[0].mxu0
    %1556 = vdwg.mxu0
    %vm1557 = vcmp.gt.f32.partialorder %v1554, 0.0
    %v1558 = vmul.f32 %v1554, 0.01
    %v1559 = vsel %vm1557, %v1554, %v1558
    %1560 = vst [vmem:[#allocation7] sm:$0xff] %v1559
    // Predicated region
    $region42: #{forward.1} parent=1 // pred_check
      _
    $region43: #{forward.1} parent=1 // pred_check_branch
      %1562 = sbr.rel (0) target = $region45
    $region44: #{forward.1} parent=1 // pred_region
      %s1564 = ssub.s32 128, 128
      %1565 = vsyncadd [#allocation4], %s1564
      %s1567 = sshll.u32 [#allocation7], 4
      %s1568 = int_to_ptr.vmem [resolvable:$true] %s1567
      %1570 = dma.vmem_to_hbm [thread:$0]  %s1568, 128, %s8, [#allocation4]
    $region45: #{forward.1} parent=1 // pred_fallthru
      _
    // Predicated region
    $region46: #{forward.1} parent=1 // pred_check
      _
    $region47: #{forward.1} parent=1 // pred_check_branch
      %1572 = sbr.rel (0) target = $region49
    $region48: #{forward.1} parent=1 // pred_region
      %1573 = dma.done [#allocation4], 128
    $region49: #{forward.1} parent=1 // pred_fallthru
      _
    %1574 = vsyncpa [#allocation3], 1
    %1575 = vsyncpa [#allocation6], 1
    %1576 = vsyncpa [#allocation4], 1

</llo_original>
